<compile_context>
chip_gen: v6e
topology: v6e:2x2x1
jax: 0.10.0
libtpu: 0.0.40
codegen_flags: <defaults>
</compile_context>

<pallas_src>
import functools

import jax
import jax.numpy as jnp
from jax import lax
from jax.experimental import pallas as pl
from jax.experimental.pallas import tpu as pltpu


def _resblock_kernel(x_ref, w3_ref, b1_ref, w1t_ref, b2_ref, o_ref, slab_ref,
                     *, H, W, Wp):
  """Fused ResBlock for one batch element, channel-major NCHW form.

  x_ref   : (1, Cin, H*W)   f32   raw input, spatially flattened (free reshape)
  w3_ref  : (9, Cmid, Cin)  bf16  3x3 conv weights per tap, BN scale folded in
  b1_ref  : (Cmid, 1)       f32   folded conv bias + BN shift
  w1t_ref : (Cin, Cmid)     bf16  1x1 conv weight (transposed)
  b2_ref  : (Cin, 1)        f32   1x1 conv bias
  o_ref   : (1, Cin, H*W)   f32   output, spatially flattened NCHW
  slab_ref: (Cin, L)        bf16  VMEM scratch: zero-padded flat image slab
  """
  Hw = H * Wp
  xf = x_ref[0]                                          # (Cin, H*W) f32

  # ---- build the zero-padded bf16 slab in VMEM (no wrapper pad/astype) ------
  # slab[:, (h+1)*Wp + (w+1)] = x[:, h, w]; halo rows/cols and the Wp-W-2
  # junk columns stay zero, so every 3x3 tap window is a plain lane slice.
  slab_ref[...] = jnp.zeros_like(slab_ref)
  for h in range(H):
    dst = (h + 1) * Wp + 1
    slab_ref[:, dst:dst + W] = xf[:, h * W:(h + 1) * W].astype(jnp.bfloat16)

  # ---- Conv3x3 + BN(eval): 9 accumulated MXU matmuls, no im2col patch -------
  offs = [dy * Wp + dx for dy in range(3) for dx in range(3)]
  mid = jnp.dot(w3_ref[0], slab_ref[:, offs[0]:offs[0] + Hw],
                preferred_element_type=jnp.float32)
  for t in range(1, 9):
    mid = mid + jnp.dot(w3_ref[t], slab_ref[:, offs[t]:offs[t] + Hw],
                        preferred_element_type=jnp.float32)
  # Dropout(0.1) is identity in eval; then ReLU.
  mid = jnp.maximum(mid + b1_ref[...], 0.0).astype(jnp.bfloat16)  # (Cmid, Hw)

  # ---- Conv1x1 + bias --------------------------------------------------------
  out = jnp.dot(w1t_ref[...], mid,
                preferred_element_type=jnp.float32) + b2_ref[...]  # (Cin, Hw)

  # ---- drop Wp-W junk columns, add f32 residual, final ReLU, one dense store -
  out = jnp.concatenate([out[:, h * Wp:h * Wp + W] for h in range(H)], axis=1)
  o_ref[0] = jnp.maximum(out + xf, 0.0)


@jax.jit
def resblock_forward(x_nchw, w3, b1, gamma, beta, run_mean, run_var, w1, b2,
                     eps=1e-5):
  """x_nchw: (N, Cin, H, W) float32 (PyTorch layout); returns same layout."""
  N, Cin, H, W = x_nchw.shape
  Cmid = w3.shape[3]                       # w3 is HWIO: (3, 3, Cin, Cmid)
  Wp = -(-(W + 2) // 8) * 8                # padded row width (sublane friendly)
  Hw = H * Wp                              # wide spatial extent (lane dim)
  L = (H + 2) * Wp + 2                     # flat slab length per channel

  # ---- fold BatchNorm (eval) into the 3x3 conv; bf16 weights, f32 biases ----
  inv_std = gamma / jnp.sqrt(run_var + eps)                        # (Cmid,)
  w3_taps = (jnp.transpose(w3, (0, 1, 3, 2)).reshape(9, Cmid, Cin)
             * inv_std[None, :, None]).astype(jnp.bfloat16)        # (9,Cmid,Cin)
  b1f = ((b1 - run_mean) * inv_std + beta).reshape(Cmid, 1).astype(jnp.float32)
  w1t = w1.reshape(Cmid, Cin).T.astype(jnp.bfloat16)               # (Cin, Cmid)
  b2f = b2.reshape(Cin, 1).astype(jnp.float32)

  # Layout-preserving (free) reshape; no pad / astype HBM round trips.
  x_flat = x_nchw.reshape(N, Cin, H * W)

  # VMEM budget: double-buffered x/out blocks + weights, slab scratch,
  # in-kernel intermediates (mid, wide out, dense out, one tap operand).
  blk_bytes = Cin * H * W * 4
  wgt_bytes = (9 * Cmid * Cin + Cin * Cmid) * 2 + (Cmid + Cin) * 4
  slab_bytes = Cin * L * 2
  interm_bytes = (Cmid * 4 + 2 * Cin * 4 + Cin * 2) * Hw
  est = 2 * (2 * blk_bytes + wgt_bytes) + slab_bytes + interm_bytes
  vmem_limit = int(min(max(4 * est, 8 * 2**20), 48 * 2**20))

  cost = pl.CostEstimate(
      flops=2 * N * Hw * Cmid * (9 * Cin + Cin),
      transcendentals=0,
      bytes_accessed=N * Cin * H * W * 8 + wgt_bytes)

  kernel = functools.partial(_resblock_kernel, H=H, W=W, Wp=Wp)

  # ---- hot path: single fused Pallas kernel ---------------------------------
  out_flat = pl.pallas_call(
      kernel,
      out_shape=jax.ShapeDtypeStruct((N, Cin, H * W), jnp.float32),
      grid_spec=pltpu.PrefetchScalarGridSpec(
          num_scalar_prefetch=0,
          grid=(N,),
          in_specs=[
              pl.BlockSpec((1, Cin, H * W), lambda n: (n, 0, 0)),
              pl.BlockSpec((9, Cmid, Cin), lambda n: (0, 0, 0)),
              pl.BlockSpec((Cmid, 1), lambda n: (0, 0)),
              pl.BlockSpec((Cin, Cmid), lambda n: (0, 0)),
              pl.BlockSpec((Cin, 1), lambda n: (0, 0)),
          ],
          out_specs=pl.BlockSpec((1, Cin, H * W), lambda n: (n, 0, 0)),
          scratch_shapes=[pltpu.VMEM((Cin, L), jnp.bfloat16)],
      ),
      compiler_params=pltpu.CompilerParams(
          dimension_semantics=("parallel",),
          vmem_limit_bytes=vmem_limit),
      cost_estimate=cost,
  )(x_flat, w3_taps, b1f, w1t, b2f)

  # Free, layout-preserving reshape back to NCHW — no copy, no slice.
  return out_flat.reshape(N, Cin, H, W)


def _reference(x, w3, b1, gamma, beta, run_mean, run_var, w1, b2, eps=1e-5):
  """Pure-JAX f32 reference (eval-mode ResBlock), NCHW throughout."""
  Cmid = w3.shape[3]
  Cin = w3.shape[2]
  y = lax.conv_general_dilated(
      x, w3, window_strides=(1, 1), padding="SAME",
      dimension_numbers=("NCHW", "HWIO", "NCHW")) + b1.reshape(1, Cmid, 1, 1)
  y = ((y - run_mean.reshape(1, Cmid, 1, 1))
       / jnp.sqrt(run_var.reshape(1, Cmid, 1, 1) + eps)
       * gamma.reshape(1, Cmid, 1, 1) + beta.reshape(1, Cmid, 1, 1))
  y = jnp.maximum(y, 0.0)                               # Dropout(eval) + ReLU
  y = lax.conv_general_dilated(
      y, w1, window_strides=(1, 1), padding="VALID",
      dimension_numbers=("NCHW", "HWIO", "NCHW")) + b2.reshape(1, Cin, 1, 1)
  return jnp.maximum(y + x, 0.0)


if __name__ == "__main__":
  key = jax.random.PRNGKey(0)
  N, Cin, Cmid, H, W = 2, 4, 8, 16, 16

  ks = jax.random.split(key, 10)
  x = jax.random.normal(ks[0], (N, Cin, H, W), jnp.float32)

  # nn.Conv2d(in_channel, channel, 3, padding=1)  -> HWIO weight + bias
  w3 = jax.random.normal(ks[1], (3, 3, Cin, Cmid), jnp.float32) * 0.1
  b1 = jax.random.normal(ks[2], (Cmid,), jnp.float32) * 0.1
  # nn.BatchNorm2d(channel) — deterministic affine + running stats
  gamma = 1.0 + 0.1 * jax.random.normal(ks[3], (Cmid,), jnp.float32)
  beta = 0.1 * jax.random.normal(ks[4], (Cmid,), jnp.float32)
  run_mean = 0.1 * jax.random.normal(ks[5], (Cmid,), jnp.float32)
  run_var = jnp.abs(1.0 + 0.1 * jax.random.normal(ks[6], (Cmid,), jnp.float32))
  # nn.Conv2d(channel, in_channel, 1)
  w1 = jax.random.normal(ks[7], (1, 1, Cmid, Cin), jnp.float32) * 0.1
  b2 = jax.random.normal(ks[8], (Cin,), jnp.float32) * 0.1

  out = resblock_forward(x, w3, b1, gamma, beta, run_mean, run_var, w1, b2)
  out = jax.block_until_ready(out)

  ref = _reference(x, w3, b1, gamma, beta, run_mean, run_var, w1, b2)
  assert out.shape == (N, Cin, H, W)
  # Matmul operands are bf16 (f32 accumulation/epilogue), but the residual/skip
  # path is now pure f32, so the tolerance is tighter than the previous 5e-2.
  assert jnp.max(jnp.abs(out - ref)) < 3e-2, "mismatch vs reference"

  print("KERNEL_OK")
</pallas_src>

<mosaic_0001>
module attributes {stable_mosaic.version = 11 : i64} {
  func.func @_resblock_kernel(%arg0: i32, %arg1: memref<1x4x256xf32, #tpu.memory_space<vmem>>, %arg2: memref<9x8x4xbf16, #tpu.memory_space<vmem>>, %arg3: memref<8x1xf32, #tpu.memory_space<vmem>>, %arg4: memref<4x8xbf16, #tpu.memory_space<vmem>>, %arg5: memref<4x1xf32, #tpu.memory_space<vmem>>, %arg6: memref<1x4x256xf32, #tpu.memory_space<vmem>>, %arg7: memref<4x434xbf16, #tpu.memory_space<vmem>>) attributes {dimension_semantics = [#tpu.dimension_semantics<parallel>], iteration_bounds = array<i64: 2>, scalar_prefetch = 0 : i64, scratch_operands = 1 : i64, tpu.core_type = #tpu.core_type<tc>, window_params = [{transform_indices = @transform_0, window_bounds = array<i64: 1, 4, 256>}, {pipeline_mode = #tpu.pipeline_mode<synchronous>, transform_indices = @transform_1, window_bounds = array<i64: 9, 8, 4>}, {pipeline_mode = #tpu.pipeline_mode<synchronous>, transform_indices = @transform_2, window_bounds = array<i64: 8, 1>}, {pipeline_mode = #tpu.pipeline_mode<synchronous>, transform_indices = @transform_3, window_bounds = array<i64: 4, 8>}, {pipeline_mode = #tpu.pipeline_mode<synchronous>, transform_indices = @transform_4, window_bounds = array<i64: 4, 1>}, {transform_indices = @transform_5, window_bounds = array<i64: 1, 4, 256>}]} {
    %c0 = arith.constant 0 : index
    %c0_0 = arith.constant 0 : index
    %c0_1 = arith.constant 0 : index
    %0 = vector.load %arg1[%c0, %c0_0, %c0_1] : memref<1x4x256xf32, #tpu.memory_space<vmem>>, vector<1x4x256xf32>
    %1 = vector.shape_cast %0 : vector<1x4x256xf32> to vector<4x256xf32>
    %cst = arith.constant 0.000000e+00 : bf16
    %2 = vector.broadcast %cst : bf16 to vector<4x434xbf16>
    %c0_2 = arith.constant 0 : index
    %c0_3 = arith.constant 0 : index
    %3 = vector.load %arg7[%c0_2, %c0_3] : memref<4x434xbf16, #tpu.memory_space<vmem>>, vector<4x434xbf16>
    tpu.vector_store %arg7[%c0_2, %c0_3], %2 {strides = array<i32>} : memref<4x434xbf16, #tpu.memory_space<vmem>>, vector<4x434xbf16>,
    %4 = vector.extract_strided_slice %1 {offsets = [0, 0], sizes = [4, 16], strides = [1, 1]} : vector<4x256xf32> to vector<4x16xf32>
    %5 = arith.truncf %4 : vector<4x16xf32> to vector<4x16xbf16>
    %c0_4 = arith.constant 0 : index
    %c25 = arith.constant 25 : index
    %6 = vector.load %arg7[%c0_4, %c25] : memref<4x434xbf16, #tpu.memory_space<vmem>>, vector<4x16xbf16>
    tpu.vector_store %arg7[%c0_4, %c25], %5 {strides = array<i32>} : memref<4x434xbf16, #tpu.memory_space<vmem>>, vector<4x16xbf16>,
    %7 = vector.extract_strided_slice %1 {offsets = [0, 16], sizes = [4, 16], strides = [1, 1]} : vector<4x256xf32> to vector<4x16xf32>
    %8 = arith.truncf %7 : vector<4x16xf32> to vector<4x16xbf16>
    %c0_5 = arith.constant 0 : index
    %c49 = arith.constant 49 : index
    %9 = vector.load %arg7[%c0_5, %c49] : memref<4x434xbf16, #tpu.memory_space<vmem>>, vector<4x16xbf16>
    tpu.vector_store %arg7[%c0_5, %c49], %8 {strides = array<i32>} : memref<4x434xbf16, #tpu.memory_space<vmem>>, vector<4x16xbf16>,
    %10 = vector.extract_strided_slice %1 {offsets = [0, 32], sizes = [4, 16], strides = [1, 1]} : vector<4x256xf32> to vector<4x16xf32>
    %11 = arith.truncf %10 : vector<4x16xf32> to vector<4x16xbf16>
    %c0_6 = arith.constant 0 : index
    %c73 = arith.constant 73 : index
    %12 = vector.load %arg7[%c0_6, %c73] : memref<4x434xbf16, #tpu.memory_space<vmem>>, vector<4x16xbf16>
    tpu.vector_store %arg7[%c0_6, %c73], %11 {strides = array<i32>} : memref<4x434xbf16, #tpu.memory_space<vmem>>, vector<4x16xbf16>,
    %13 = vector.extract_strided_slice %1 {offsets = [0, 48], sizes = [4, 16], strides = [1, 1]} : vector<4x256xf32> to vector<4x16xf32>
    %14 = arith.truncf %13 : vector<4x16xf32> to vector<4x16xbf16>
    %c0_7 = arith.constant 0 : index
    %c97 = arith.constant 97 : index
    %15 = vector.load %arg7[%c0_7, %c97] : memref<4x434xbf16, #tpu.memory_space<vmem>>, vector<4x16xbf16>
    tpu.vector_store %arg7[%c0_7, %c97], %14 {strides = array<i32>} : memref<4x434xbf16, #tpu.memory_space<vmem>>, vector<4x16xbf16>,
    %16 = vector.extract_strided_slice %1 {offsets = [0, 64], sizes = [4, 16], strides = [1, 1]} : vector<4x256xf32> to vector<4x16xf32>
    %17 = arith.truncf %16 : vector<4x16xf32> to vector<4x16xbf16>
    %c0_8 = arith.constant 0 : index
    %c121 = arith.constant 121 : index
    %18 = vector.load %arg7[%c0_8, %c121] : memref<4x434xbf16, #tpu.memory_space<vmem>>, vector<4x16xbf16>
    tpu.vector_store %arg7[%c0_8, %c121], %17 {strides = array<i32>} : memref<4x434xbf16, #tpu.memory_space<vmem>>, vector<4x16xbf16>,
    %19 = vector.extract_strided_slice %1 {offsets = [0, 80], sizes = [4, 16], strides = [1, 1]} : vector<4x256xf32> to vector<4x16xf32>
    %20 = arith.truncf %19 : vector<4x16xf32> to vector<4x16xbf16>
    %c0_9 = arith.constant 0 : index
    %c145 = arith.constant 145 : index
    %21 = vector.load %arg7[%c0_9, %c145] : memref<4x434xbf16, #tpu.memory_space<vmem>>, vector<4x16xbf16>
    tpu.vector_store %arg7[%c0_9, %c145], %20 {strides = array<i32>} : memref<4x434xbf16, #tpu.memory_space<vmem>>, vector<4x16xbf16>,
    %22 = vector.extract_strided_slice %1 {offsets = [0, 96], sizes = [4, 16], strides = [1, 1]} : vector<4x256xf32> to vector<4x16xf32>
    %23 = arith.truncf %22 : vector<4x16xf32> to vector<4x16xbf16>
    %c0_10 = arith.constant 0 : index
    %c169 = arith.constant 169 : index
    %24 = vector.load %arg7[%c0_10, %c169] : memref<4x434xbf16, #tpu.memory_space<vmem>>, vector<4x16xbf16>
    tpu.vector_store %arg7[%c0_10, %c169], %23 {strides = array<i32>} : memref<4x434xbf16, #tpu.memory_space<vmem>>, vector<4x16xbf16>,
    %25 = vector.extract_strided_slice %1 {offsets = [0, 112], sizes = [4, 16], strides = [1, 1]} : vector<4x256xf32> to vector<4x16xf32>
    %26 = arith.truncf %25 : vector<4x16xf32> to vector<4x16xbf16>
    %c0_11 = arith.constant 0 : index
    %c193 = arith.constant 193 : index
    %27 = vector.load %arg7[%c0_11, %c193] : memref<4x434xbf16, #tpu.memory_space<vmem>>, vector<4x16xbf16>
    tpu.vector_store %arg7[%c0_11, %c193], %26 {strides = array<i32>} : memref<4x434xbf16, #tpu.memory_space<vmem>>, vector<4x16xbf16>,
    %28 = vector.extract_strided_slice %1 {offsets = [0, 128], sizes = [4, 16], strides = [1, 1]} : vector<4x256xf32> to vector<4x16xf32>
    %29 = arith.truncf %28 : vector<4x16xf32> to vector<4x16xbf16>
    %c0_12 = arith.constant 0 : index
    %c217 = arith.constant 217 : index
    %30 = vector.load %arg7[%c0_12, %c217] : memref<4x434xbf16, #tpu.memory_space<vmem>>, vector<4x16xbf16>
    tpu.vector_store %arg7[%c0_12, %c217], %29 {strides = array<i32>} : memref<4x434xbf16, #tpu.memory_space<vmem>>, vector<4x16xbf16>,
    %31 = vector.extract_strided_slice %1 {offsets = [0, 144], sizes = [4, 16], strides = [1, 1]} : vector<4x256xf32> to vector<4x16xf32>
    %32 = arith.truncf %31 : vector<4x16xf32> to vector<4x16xbf16>
    %c0_13 = arith.constant 0 : index
    %c241 = arith.constant 241 : index
    %33 = vector.load %arg7[%c0_13, %c241] : memref<4x434xbf16, #tpu.memory_space<vmem>>, vector<4x16xbf16>
    tpu.vector_store %arg7[%c0_13, %c241], %32 {strides = array<i32>} : memref<4x434xbf16, #tpu.memory_space<vmem>>, vector<4x16xbf16>,
    %34 = vector.extract_strided_slice %1 {offsets = [0, 160], sizes = [4, 16], strides = [1, 1]} : vector<4x256xf32> to vector<4x16xf32>
    %35 = arith.truncf %34 : vector<4x16xf32> to vector<4x16xbf16>
    %c0_14 = arith.constant 0 : index
    %c265 = arith.constant 265 : index
    %36 = vector.load %arg7[%c0_14, %c265] : memref<4x434xbf16, #tpu.memory_space<vmem>>, vector<4x16xbf16>
    tpu.vector_store %arg7[%c0_14, %c265], %35 {strides = array<i32>} : memref<4x434xbf16, #tpu.memory_space<vmem>>, vector<4x16xbf16>,
    %37 = vector.extract_strided_slice %1 {offsets = [0, 176], sizes = [4, 16], strides = [1, 1]} : vector<4x256xf32> to vector<4x16xf32>
    %38 = arith.truncf %37 : vector<4x16xf32> to vector<4x16xbf16>
    %c0_15 = arith.constant 0 : index
    %c289 = arith.constant 289 : index
    %39 = vector.load %arg7[%c0_15, %c289] : memref<4x434xbf16, #tpu.memory_space<vmem>>, vector<4x16xbf16>
    tpu.vector_store %arg7[%c0_15, %c289], %38 {strides = array<i32>} : memref<4x434xbf16, #tpu.memory_space<vmem>>, vector<4x16xbf16>,
    %40 = vector.extract_strided_slice %1 {offsets = [0, 192], sizes = [4, 16], strides = [1, 1]} : vector<4x256xf32> to vector<4x16xf32>
    %41 = arith.truncf %40 : vector<4x16xf32> to vector<4x16xbf16>
    %c0_16 = arith.constant 0 : index
    %c313 = arith.constant 313 : index
    %42 = vector.load %arg7[%c0_16, %c313] : memref<4x434xbf16, #tpu.memory_space<vmem>>, vector<4x16xbf16>
    tpu.vector_store %arg7[%c0_16, %c313], %41 {strides = array<i32>} : memref<4x434xbf16, #tpu.memory_space<vmem>>, vector<4x16xbf16>,
    %43 = vector.extract_strided_slice %1 {offsets = [0, 208], sizes = [4, 16], strides = [1, 1]} : vector<4x256xf32> to vector<4x16xf32>
    %44 = arith.truncf %43 : vector<4x16xf32> to vector<4x16xbf16>
    %c0_17 = arith.constant 0 : index
    %c337 = arith.constant 337 : index
    %45 = vector.load %arg7[%c0_17, %c337] : memref<4x434xbf16, #tpu.memory_space<vmem>>, vector<4x16xbf16>
    tpu.vector_store %arg7[%c0_17, %c337], %44 {strides = array<i32>} : memref<4x434xbf16, #tpu.memory_space<vmem>>, vector<4x16xbf16>,
    %46 = vector.extract_strided_slice %1 {offsets = [0, 224], sizes = [4, 16], strides = [1, 1]} : vector<4x256xf32> to vector<4x16xf32>
    %47 = arith.truncf %46 : vector<4x16xf32> to vector<4x16xbf16>
    %c0_18 = arith.constant 0 : index
    %c361 = arith.constant 361 : index
    %48 = vector.load %arg7[%c0_18, %c361] : memref<4x434xbf16, #tpu.memory_space<vmem>>, vector<4x16xbf16>
    tpu.vector_store %arg7[%c0_18, %c361], %47 {strides = array<i32>} : memref<4x434xbf16, #tpu.memory_space<vmem>>, vector<4x16xbf16>,
    %49 = vector.extract_strided_slice %1 {offsets = [0, 240], sizes = [4, 16], strides = [1, 1]} : vector<4x256xf32> to vector<4x16xf32>
    %50 = arith.truncf %49 : vector<4x16xf32> to vector<4x16xbf16>
    %c0_19 = arith.constant 0 : index
    %c385 = arith.constant 385 : index
    %51 = vector.load %arg7[%c0_19, %c385] : memref<4x434xbf16, #tpu.memory_space<vmem>>, vector<4x16xbf16>
    tpu.vector_store %arg7[%c0_19, %c385], %50 {strides = array<i32>} : memref<4x434xbf16, #tpu.memory_space<vmem>>, vector<4x16xbf16>,
    %c0_20 = arith.constant 0 : index
    %c0_21 = arith.constant 0 : index
    %c0_22 = arith.constant 0 : index
    %52 = vector.load %arg2[%c0_20, %c0_21, %c0_22] : memref<9x8x4xbf16, #tpu.memory_space<vmem>>, vector<1x8x4xbf16>
    %53 = vector.shape_cast %52 : vector<1x8x4xbf16> to vector<8x4xbf16>
    %c0_23 = arith.constant 0 : index
    %c0_24 = arith.constant 0 : index
    %54 = vector.load %arg7[%c0_23, %c0_24] : memref<4x434xbf16, #tpu.memory_space<vmem>>, vector<4x384xbf16>
    %cst_25 = arith.constant dense<0.000000e+00> : vector<8x384xf32>
    %55 = tpu.matmul %53, %54, %cst_25 {dimension_numbers = #tpu.dot_dimension_numbers<[1], [0], [0], [1], [0, 0, 1, 1], [], []>} : vector<8x4xbf16>, vector<4x384xbf16>, vector<8x384xf32> -> vector<8x384xf32>
    %c1 = arith.constant 1 : index
    %c0_26 = arith.constant 0 : index
    %c0_27 = arith.constant 0 : index
    %56 = vector.load %arg2[%c1, %c0_26, %c0_27] : memref<9x8x4xbf16, #tpu.memory_space<vmem>>, vector<1x8x4xbf16>
    %57 = vector.shape_cast %56 : vector<1x8x4xbf16> to vector<8x4xbf16>
    %c0_28 = arith.constant 0 : index
    %c1_29 = arith.constant 1 : index
    %58 = vector.load %arg7[%c0_28, %c1_29] : memref<4x434xbf16, #tpu.memory_space<vmem>>, vector<4x384xbf16>
    %cst_30 = arith.constant dense<0.000000e+00> : vector<8x384xf32>
    %59 = tpu.matmul %57, %58, %cst_30 {dimension_numbers = #tpu.dot_dimension_numbers<[1], [0], [0], [1], [0, 0, 1, 1], [], []>} : vector<8x4xbf16>, vector<4x384xbf16>, vector<8x384xf32> -> vector<8x384xf32>
    %60 = arith.addf %55, %59 : vector<8x384xf32>
    %c2 = arith.constant 2 : index
    %c0_31 = arith.constant 0 : index
    %c0_32 = arith.constant 0 : index
    %61 = vector.load %arg2[%c2, %c0_31, %c0_32] : memref<9x8x4xbf16, #tpu.memory_space<vmem>>, vector<1x8x4xbf16>
    %62 = vector.shape_cast %61 : vector<1x8x4xbf16> to vector<8x4xbf16>
    %c0_33 = arith.constant 0 : index
    %c2_34 = arith.constant 2 : index
    %63 = vector.load %arg7[%c0_33, %c2_34] : memref<4x434xbf16, #tpu.memory_space<vmem>>, vector<4x384xbf16>
    %cst_35 = arith.constant dense<0.000000e+00> : vector<8x384xf32>
    %64 = tpu.matmul %62, %63, %cst_35 {dimension_numbers = #tpu.dot_dimension_numbers<[1], [0], [0], [1], [0, 0, 1, 1], [], []>} : vector<8x4xbf16>, vector<4x384xbf16>, vector<8x384xf32> -> vector<8x384xf32>
    %65 = arith.addf %60, %64 : vector<8x384xf32>
    %c3 = arith.constant 3 : index
    %c0_36 = arith.constant 0 : index
    %c0_37 = arith.constant 0 : index
    %66 = vector.load %arg2[%c3, %c0_36, %c0_37] : memref<9x8x4xbf16, #tpu.memory_space<vmem>>, vector<1x8x4xbf16>
    %67 = vector.shape_cast %66 : vector<1x8x4xbf16> to vector<8x4xbf16>
    %c0_38 = arith.constant 0 : index
    %c24 = arith.constant 24 : index
    %68 = vector.load %arg7[%c0_38, %c24] : memref<4x434xbf16, #tpu.memory_space<vmem>>, vector<4x384xbf16>
    %cst_39 = arith.constant dense<0.000000e+00> : vector<8x384xf32>
    %69 = tpu.matmul %67, %68, %cst_39 {dimension_numbers = #tpu.dot_dimension_numbers<[1], [0], [0], [1], [0, 0, 1, 1], [], []>} : vector<8x4xbf16>, vector<4x384xbf16>, vector<8x384xf32> -> vector<8x384xf32>
    %70 = arith.addf %65, %69 : vector<8x384xf32>
    %c4 = arith.constant 4 : index
    %c0_40 = arith.constant 0 : index
    %c0_41 = arith.constant 0 : index
    %71 = vector.load %arg2[%c4, %c0_40, %c0_41] : memref<9x8x4xbf16, #tpu.memory_space<vmem>>, vector<1x8x4xbf16>
    %72 = vector.shape_cast %71 : vector<1x8x4xbf16> to vector<8x4xbf16>
    %c0_42 = arith.constant 0 : index
    %c25_43 = arith.constant 25 : index
    %73 = vector.load %arg7[%c0_42, %c25_43] : memref<4x434xbf16, #tpu.memory_space<vmem>>, vector<4x384xbf16>
    %cst_44 = arith.constant dense<0.000000e+00> : vector<8x384xf32>
    %74 = tpu.matmul %72, %73, %cst_44 {dimension_numbers = #tpu.dot_dimension_numbers<[1], [0], [0], [1], [0, 0, 1, 1], [], []>} : vector<8x4xbf16>, vector<4x384xbf16>, vector<8x384xf32> -> vector<8x384xf32>
    %75 = arith.addf %70, %74 : vector<8x384xf32>
    %c5 = arith.constant 5 : index
    %c0_45 = arith.constant 0 : index
    %c0_46 = arith.constant 0 : index
    %76 = vector.load %arg2[%c5, %c0_45, %c0_46] : memref<9x8x4xbf16, #tpu.memory_space<vmem>>, vector<1x8x4xbf16>
    %77 = vector.shape_cast %76 : vector<1x8x4xbf16> to vector<8x4xbf16>
    %c0_47 = arith.constant 0 : index
    %c26 = arith.constant 26 : index
    %78 = vector.load %arg7[%c0_47, %c26] : memref<4x434xbf16, #tpu.memory_space<vmem>>, vector<4x384xbf16>
    %cst_48 = arith.constant dense<0.000000e+00> : vector<8x384xf32>
    %79 = tpu.matmul %77, %78, %cst_48 {dimension_numbers = #tpu.dot_dimension_numbers<[1], [0], [0], [1], [0, 0, 1, 1], [], []>} : vector<8x4xbf16>, vector<4x384xbf16>, vector<8x384xf32> -> vector<8x384xf32>
    %80 = arith.addf %75, %79 : vector<8x384xf32>
    %c6 = arith.constant 6 : index
    %c0_49 = arith.constant 0 : index
    %c0_50 = arith.constant 0 : index
    %81 = vector.load %arg2[%c6, %c0_49, %c0_50] : memref<9x8x4xbf16, #tpu.memory_space<vmem>>, vector<1x8x4xbf16>
    %82 = vector.shape_cast %81 : vector<1x8x4xbf16> to vector<8x4xbf16>
    %c0_51 = arith.constant 0 : index
    %c48 = arith.constant 48 : index
    %83 = vector.load %arg7[%c0_51, %c48] : memref<4x434xbf16, #tpu.memory_space<vmem>>, vector<4x384xbf16>
    %cst_52 = arith.constant dense<0.000000e+00> : vector<8x384xf32>
    %84 = tpu.matmul %82, %83, %cst_52 {dimension_numbers = #tpu.dot_dimension_numbers<[1], [0], [0], [1], [0, 0, 1, 1], [], []>} : vector<8x4xbf16>, vector<4x384xbf16>, vector<8x384xf32> -> vector<8x384xf32>
    %85 = arith.addf %80, %84 : vector<8x384xf32>
    %c7 = arith.constant 7 : index
    %c0_53 = arith.constant 0 : index
    %c0_54 = arith.constant 0 : index
    %86 = vector.load %arg2[%c7, %c0_53, %c0_54] : memref<9x8x4xbf16, #tpu.memory_space<vmem>>, vector<1x8x4xbf16>
    %87 = vector.shape_cast %86 : vector<1x8x4xbf16> to vector<8x4xbf16>
    %c0_55 = arith.constant 0 : index
    %c49_56 = arith.constant 49 : index
    %88 = vector.load %arg7[%c0_55, %c49_56] : memref<4x434xbf16, #tpu.memory_space<vmem>>, vector<4x384xbf16>
    %cst_57 = arith.constant dense<0.000000e+00> : vector<8x384xf32>
    %89 = tpu.matmul %87, %88, %cst_57 {dimension_numbers = #tpu.dot_dimension_numbers<[1], [0], [0], [1], [0, 0, 1, 1], [], []>} : vector<8x4xbf16>, vector<4x384xbf16>, vector<8x384xf32> -> vector<8x384xf32>
    %90 = arith.addf %85, %89 : vector<8x384xf32>
    %c8 = arith.constant 8 : index
    %c0_58 = arith.constant 0 : index
    %c0_59 = arith.constant 0 : index
    %91 = vector.load %arg2[%c8, %c0_58, %c0_59] : memref<9x8x4xbf16, #tpu.memory_space<vmem>>, vector<1x8x4xbf16>
    %92 = vector.shape_cast %91 : vector<1x8x4xbf16> to vector<8x4xbf16>
    %c0_60 = arith.constant 0 : index
    %c50 = arith.constant 50 : index
    %93 = vector.load %arg7[%c0_60, %c50] : memref<4x434xbf16, #tpu.memory_space<vmem>>, vector<4x384xbf16>
    %cst_61 = arith.constant dense<0.000000e+00> : vector<8x384xf32>
    %94 = tpu.matmul %92, %93, %cst_61 {dimension_numbers = #tpu.dot_dimension_numbers<[1], [0], [0], [1], [0, 0, 1, 1], [], []>} : vector<8x4xbf16>, vector<4x384xbf16>, vector<8x384xf32> -> vector<8x384xf32>
    %95 = arith.addf %90, %94 : vector<8x384xf32>
    %c0_62 = arith.constant 0 : index
    %c0_63 = arith.constant 0 : index
    %96 = vector.load %arg3[%c0_62, %c0_63] : memref<8x1xf32, #tpu.memory_space<vmem>>, vector<8x1xf32>
    %97 = vector.broadcast %96 : vector<8x1xf32> to vector<8x384xf32>
    %98 = arith.addf %95, %97 : vector<8x384xf32>
    %cst_64 = arith.constant 0.000000e+00 : f32
    %99 = vector.broadcast %cst_64 : f32 to vector<8x384xf32>
    %100 = arith.maximumf %98, %99 : vector<8x384xf32>
    %101 = arith.truncf %100 : vector<8x384xf32> to vector<8x384xbf16>
    %c0_65 = arith.constant 0 : index
    %c0_66 = arith.constant 0 : index
    %102 = vector.load %arg4[%c0_65, %c0_66] : memref<4x8xbf16, #tpu.memory_space<vmem>>, vector<4x8xbf16>
    %cst_67 = arith.constant dense<0.000000e+00> : vector<4x384xf32>
    %103 = tpu.matmul %102, %101, %cst_67 {dimension_numbers = #tpu.dot_dimension_numbers<[1], [0], [0], [1], [0, 0, 1, 1], [], []>} : vector<4x8xbf16>, vector<8x384xbf16>, vector<4x384xf32> -> vector<4x384xf32>
    %c0_68 = arith.constant 0 : index
    %c0_69 = arith.constant 0 : index
    %104 = vector.load %arg5[%c0_68, %c0_69] : memref<4x1xf32, #tpu.memory_space<vmem>>, vector<4x1xf32>
    %105 = vector.broadcast %104 : vector<4x1xf32> to vector<4x384xf32>
    %106 = arith.addf %103, %105 : vector<4x384xf32>
    %107 = vector.extract_strided_slice %106 {offsets = [0, 0], sizes = [4, 16], strides = [1, 1]} : vector<4x384xf32> to vector<4x16xf32>
    %108 = vector.extract_strided_slice %106 {offsets = [0, 24], sizes = [4, 16], strides = [1, 1]} : vector<4x384xf32> to vector<4x16xf32>
    %109 = vector.extract_strided_slice %106 {offsets = [0, 48], sizes = [4, 16], strides = [1, 1]} : vector<4x384xf32> to vector<4x16xf32>
    %110 = vector.extract_strided_slice %106 {offsets = [0, 72], sizes = [4, 16], strides = [1, 1]} : vector<4x384xf32> to vector<4x16xf32>
    %111 = vector.extract_strided_slice %106 {offsets = [0, 96], sizes = [4, 16], strides = [1, 1]} : vector<4x384xf32> to vector<4x16xf32>
    %112 = vector.extract_strided_slice %106 {offsets = [0, 120], sizes = [4, 16], strides = [1, 1]} : vector<4x384xf32> to vector<4x16xf32>
    %113 = vector.extract_strided_slice %106 {offsets = [0, 144], sizes = [4, 16], strides = [1, 1]} : vector<4x384xf32> to vector<4x16xf32>
    %114 = vector.extract_strided_slice %106 {offsets = [0, 168], sizes = [4, 16], strides = [1, 1]} : vector<4x384xf32> to vector<4x16xf32>
    %115 = vector.extract_strided_slice %106 {offsets = [0, 192], sizes = [4, 16], strides = [1, 1]} : vector<4x384xf32> to vector<4x16xf32>
    %116 = vector.extract_strided_slice %106 {offsets = [0, 216], sizes = [4, 16], strides = [1, 1]} : vector<4x384xf32> to vector<4x16xf32>
    %117 = vector.extract_strided_slice %106 {offsets = [0, 240], sizes = [4, 16], strides = [1, 1]} : vector<4x384xf32> to vector<4x16xf32>
    %118 = vector.extract_strided_slice %106 {offsets = [0, 264], sizes = [4, 16], strides = [1, 1]} : vector<4x384xf32> to vector<4x16xf32>
    %119 = vector.extract_strided_slice %106 {offsets = [0, 288], sizes = [4, 16], strides = [1, 1]} : vector<4x384xf32> to vector<4x16xf32>
    %120 = vector.extract_strided_slice %106 {offsets = [0, 312], sizes = [4, 16], strides = [1, 1]} : vector<4x384xf32> to vector<4x16xf32>
    %121 = vector.extract_strided_slice %106 {offsets = [0, 336], sizes = [4, 16], strides = [1, 1]} : vector<4x384xf32> to vector<4x16xf32>
    %122 = vector.extract_strided_slice %106 {offsets = [0, 360], sizes = [4, 16], strides = [1, 1]} : vector<4x384xf32> to vector<4x16xf32>
    %123 = tpu.concatenate %107, %108, %109, %110, %111, %112, %113, %114, %115, %116, %117, %118, %119, %120, %121, %122 in 1 : vector<4x16xf32>, vector<4x16xf32>, vector<4x16xf32>, vector<4x16xf32>, vector<4x16xf32>, vector<4x16xf32>, vector<4x16xf32>, vector<4x16xf32>, vector<4x16xf32>, vector<4x16xf32>, vector<4x16xf32>, vector<4x16xf32>, vector<4x16xf32>, vector<4x16xf32>, vector<4x16xf32>, vector<4x16xf32> -> vector<4x256xf32>
    %124 = arith.addf %123, %1 : vector<4x256xf32>
    %cst_70 = arith.constant 0.000000e+00 : f32
    %125 = vector.broadcast %cst_70 : f32 to vector<4x256xf32>
    %126 = arith.maximumf %124, %125 : vector<4x256xf32>
    %c0_71 = arith.constant 0 : index
    %c0_72 = arith.constant 0 : index
    %c0_73 = arith.constant 0 : index
    %127 = vector.load %arg6[%c0_71, %c0_72, %c0_73] : memref<1x4x256xf32, #tpu.memory_space<vmem>>, vector<1x4x256xf32>
    %128 = vector.shape_cast %127 : vector<1x4x256xf32> to vector<4x256xf32>
    %129 = vector.shape_cast %126 : vector<4x256xf32> to vector<1x4x256xf32>
    tpu.vector_store %arg6[%c0_71, %c0_72, %c0_73], %129 {strides = array<i32>} : memref<1x4x256xf32, #tpu.memory_space<vmem>>, vector<1x4x256xf32>,
    return
  }
  func.func @transform_0(%arg0: i32) -> (i32, i32, i32) {
    %c0_i32 = arith.constant 0 : i32
    %c0_i32_0 = arith.constant 0 : i32
    %c0_i32_1 = arith.constant 0 : i32
    return %arg0, %c0_i32, %c0_i32_0 : i32, i32, i32
  }
  func.func @transform_1(%arg0: i32) -> (i32, i32, i32) {
    %c0_i32 = arith.constant 0 : i32
    %c0_i32_0 = arith.constant 0 : i32
    %c0_i32_1 = arith.constant 0 : i32
    %c0_i32_2 = arith.constant 0 : i32
    return %c0_i32, %c0_i32_0, %c0_i32_1 : i32, i32, i32
  }
  func.func @transform_2(%arg0: i32) -> (i32, i32) {
    %c0_i32 = arith.constant 0 : i32
    %c0_i32_0 = arith.constant 0 : i32
    %c0_i32_1 = arith.constant 0 : i32
    return %c0_i32, %c0_i32_0 : i32, i32
  }
  func.func @transform_3(%arg0: i32) -> (i32, i32) {
    %c0_i32 = arith.constant 0 : i32
    %c0_i32_0 = arith.constant 0 : i32
    %c0_i32_1 = arith.constant 0 : i32
    return %c0_i32, %c0_i32_0 : i32, i32
  }
  func.func @transform_4(%arg0: i32) -> (i32, i32) {
    %c0_i32 = arith.constant 0 : i32
    %c0_i32_0 = arith.constant 0 : i32
    %c0_i32_1 = arith.constant 0 : i32
    return %c0_i32, %c0_i32_0 : i32, i32
  }
  func.func @transform_5(%arg0: i32) -> (i32, i32, i32) {
    %c0_i32 = arith.constant 0 : i32
    %c0_i32_0 = arith.constant 0 : i32
    %c0_i32_1 = arith.constant 0 : i32
    return %arg0, %c0_i32, %c0_i32_0 : i32, i32, i32
  }
}

</mosaic_0001>

<llo_original>
// kernel: resblock_forward.1
$region0: #{resblock_forward.1}
  #allocation0 [shape = 'u32[]', space=smem, size = 0x4, offset = 0x4, fixed_abs, tag = 'smem constant byte address 0x4 - core index']
  #allocation1 [shape = 'u32[144,128]{1,0:T(1,128)}', space=vmem, size = 0x12000, scoped, tag = 'internal scratch']
  #allocation2 [shape = 'bf16[4,434]{1,0:T(4,128)(2,1)}', space=vmem, size = 0x1000, scoped, tag = 'scratch operand']
  %s0 = inlined_call_operand.vmem [shape: f32[2,4,256], index: 0, kind: input, shape index: {}]
  %s1 = inlined_call_operand.vmem [shape: bf16[9,8,4], index: 1, kind: input, shape index: {}]
  %s2 = inlined_call_operand.vmem [shape: f32[8,1], index: 2, kind: input, shape index: {}]
  %s3 = inlined_call_operand.vmem [shape: bf16[4,8], index: 3, kind: input, shape index: {}]
  %s4 = inlined_call_operand.vmem [shape: f32[4,1], index: 4, kind: input, shape index: {}]
  %s5 = inlined_call_operand.vmem [shape: f32[2,4,256], index: 5, kind: output, shape index: {}]
  %s6 = sld [smem:[#allocation0]]
  $region53: #{resblock_forward.1} parent=0
    _
  %s8 = ssub.s32 1, %s6
  %s9 = scalar_select 0, %s8, %s6
  loop: start=0, step=1, limit=4
  $region2: #{resblock_forward.1} parent=0 // loop_pre_header
    _
  $region3: #{resblock_forward.1} parent=0 // loop_header
    %s11 = sphi 0, %s15
    %p12 = scmp.ge.s32.totalorder %s11, 4
    %s21 = sphi 0, %s23
    %s24 = sphi 0, %s21
    %s25 = sphi 0, %s24
    %s41 = sphi 0, %s25
    %s45 = sphi 0, %s45
    %s47 = sphi 0, %s45
    %s48 = sphi 0, %s47
    %s62 = sphi 0, %s48
    %s66 = sphi 0, %s66
    %s68 = sphi 0, %s66
    %s69 = sphi 0, %s68
    %s83 = sphi 0, %s69
    %s87 = sphi 0, %s87
    %s89 = sphi 0, %s87
    %s90 = sphi 0, %s89
    %s104 = sphi 0, %s90
    %s108 = sphi 0, %s108
    %s110 = sphi 0, %s108
    %s111 = sphi 0, %s110
    %s125 = sphi 0, %s111
    %s131 = sphi 0, %s133
    %s134 = sphi 0, %s131
    %s135 = sphi 0, %s134
    %s151 = sphi 0, %s135
  $region4: #{resblock_forward.1} parent=0 // loop_header_branch
    %14 = sbr.rel (%p12) target = $region8
  $region5: #{resblock_forward.1} parent=0 // loop_body
    %s16 = ssub.s32 %s11, 1
    %s17 = ssub.s32 %s11, 2
    %s18 = sadd.s32 %s11, 1
    %s19 = ssub.s32 %s11, %s18
    %p20 = scmp.eq.s32.totalorder %s19, 0
    %s22 = sadd.s32 %s21, 1
    %s23 = scalar_select %p20, %s21, %s22
    %p26 = pneg %p20
    %p27 = scmp.eq.s32.totalorder %s11, 1
    %p28 = por %p26, %p27
    %p29 = scmp.ne.s32.totalorder %s21, %s24
    %p30 = scmp.eq.s32.totalorder %s11, 0
    %p31 = por %p29, %p30
    %p32 = scmp.ne.s32.totalorder %s21, %s24
    %p33 = scmp.eq.s32.totalorder %s16, 1
    %p34 = por %p32, %p33
    %p35 = scmp.ne.s32.totalorder %s24, %s25
    %p36 = scmp.eq.s32.totalorder %s16, 0
    %p37 = por %p35, %p36
    %p38 = scmp.ne.s32.totalorder %s24, %s25
    %p39 = scmp.eq.s32.totalorder %s17, 1
    %p40 = por %p38, %p39
    %p42 = scmp.ne.s32.totalorder %s25, %s41
    %p43 = scmp.eq.s32.totalorder %s17, 0
    %p44 = por %p42, %p43
    %s46 = sadd.s32 %s45, 1
    %p49 = scmp.eq.s32.totalorder %s11, 1
    %p50 = scmp.ne.s32.totalorder %s45, %s47
    %p51 = scmp.eq.s32.totalorder %s11, 0
    %p52 = por %p50, %p51
    %p53 = scmp.ne.s32.totalorder %s45, %s47
    %p54 = scmp.eq.s32.totalorder %s16, 1
    %p55 = por %p53, %p54
    %p56 = scmp.ne.s32.totalorder %s47, %s48
    %p57 = scmp.eq.s32.totalorder %s16, 0
    %p58 = por %p56, %p57
    %p59 = scmp.ne.s32.totalorder %s47, %s48
    %p60 = scmp.eq.s32.totalorder %s17, 1
    %p61 = por %p59, %p60
    %p63 = scmp.ne.s32.totalorder %s48, %s62
    %p64 = scmp.eq.s32.totalorder %s17, 0
    %p65 = por %p63, %p64
    %s67 = sadd.s32 %s66, 1
    %p70 = scmp.eq.s32.totalorder %s11, 1
    %p71 = scmp.ne.s32.totalorder %s66, %s68
    %p72 = scmp.eq.s32.totalorder %s11, 0
    %p73 = por %p71, %p72
    %p74 = scmp.ne.s32.totalorder %s66, %s68
    %p75 = scmp.eq.s32.totalorder %s16, 1
    %p76 = por %p74, %p75
    %p77 = scmp.ne.s32.totalorder %s68, %s69
    %p78 = scmp.eq.s32.totalorder %s16, 0
    %p79 = por %p77, %p78
    %p80 = scmp.ne.s32.totalorder %s68, %s69
    %p81 = scmp.eq.s32.totalorder %s17, 1
    %p82 = por %p80, %p81
    %p84 = scmp.ne.s32.totalorder %s69, %s83
    %p85 = scmp.eq.s32.totalorder %s17, 0
    %p86 = por %p84, %p85
    %s88 = sadd.s32 %s87, 1
    %p91 = scmp.eq.s32.totalorder %s11, 1
    %p92 = scmp.ne.s32.totalorder %s87, %s89
    %p93 = scmp.eq.s32.totalorder %s11, 0
    %p94 = por %p92, %p93
    %p95 = scmp.ne.s32.totalorder %s87, %s89
    %p96 = scmp.eq.s32.totalorder %s16, 1
    %p97 = por %p95, %p96
    %p98 = scmp.ne.s32.totalorder %s89, %s90
    %p99 = scmp.eq.s32.totalorder %s16, 0
    %p100 = por %p98, %p99
    %p101 = scmp.ne.s32.totalorder %s89, %s90
    %p102 = scmp.eq.s32.totalorder %s17, 1
    %p103 = por %p101, %p102
    %p105 = scmp.ne.s32.totalorder %s90, %s104
    %p106 = scmp.eq.s32.totalorder %s17, 0
    %p107 = por %p105, %p106
    %s109 = sadd.s32 %s108, 1
    %p112 = scmp.eq.s32.totalorder %s11, 1
    %p113 = scmp.ne.s32.totalorder %s108, %s110
    %p114 = scmp.eq.s32.totalorder %s11, 0
    %p115 = por %p113, %p114
    %p116 = scmp.ne.s32.totalorder %s108, %s110
    %p117 = scmp.eq.s32.totalorder %s16, 1
    %p118 = por %p116, %p117
    %p119 = scmp.ne.s32.totalorder %s110, %s111
    %p120 = scmp.eq.s32.totalorder %s16, 0
    %p121 = por %p119, %p120
    %p122 = scmp.ne.s32.totalorder %s110, %s111
    %p123 = scmp.eq.s32.totalorder %s17, 1
    %p124 = por %p122, %p123
    %p126 = scmp.ne.s32.totalorder %s111, %s125
    %p127 = scmp.eq.s32.totalorder %s17, 0
    %p128 = por %p126, %p127
    %s129 = ssub.s32 %s11, %s18
    %p130 = scmp.eq.s32.totalorder %s129, 0
    %s132 = sadd.s32 %s131, 1
    %s133 = scalar_select %p130, %s131, %s132
    %p136 = pneg %p130
    %p137 = scmp.eq.s32.totalorder %s11, 1
    %p138 = por %p136, %p137
    %p139 = scmp.ne.s32.totalorder %s131, %s134
    %p140 = scmp.eq.s32.totalorder %s11, 0
    %p141 = por %p139, %p140
    %p142 = scmp.ne.s32.totalorder %s131, %s134
    %p143 = scmp.eq.s32.totalorder %s16, 1
    %p144 = por %p142, %p143
    %p145 = scmp.ne.s32.totalorder %s134, %s135
    %p146 = scmp.eq.s32.totalorder %s16, 0
    %p147 = por %p145, %p146
    %p148 = scmp.ne.s32.totalorder %s134, %s135
    %p149 = scmp.eq.s32.totalorder %s17, 1
    %p150 = por %p148, %p149
    %p152 = scmp.ne.s32.totalorder %s135, %s151
    %p153 = scmp.eq.s32.totalorder %s17, 0
    %p154 = por %p152, %p153
    %p155 = scmp.le.s32.totalorder 1, %s11
    %p156 = scmp.lt.s32.totalorder %s11, 3
    %p157 = pnand %p155, %p156
    %p158 = pneg %p157
    // Predicated region
    $region9: #{resblock_forward.1} parent=5 // pred_check
      _
    $region10: #{resblock_forward.1} parent=5 // pred_check_branch
      %160 = sbr.rel (%p157) target = $region12
    $region11: #{resblock_forward.1} parent=5 // pred_region
      %s161 = ssub.s32 %s11, 1
      // Predicated region
      $region13: #{resblock_forward.1} parent=11 // pred_check
        %p162 = pneg %p58
      $region14: #{resblock_forward.1} parent=11 // pred_check_branch
        %164 = sbr.rel (%p162) target = $region16
      $region15: #{resblock_forward.1} parent=11 // pred_region
        _
      $region16: #{resblock_forward.1} parent=11 // pred_fallthru
        _
      // Predicated region
      $region17: #{resblock_forward.1} parent=11 // pred_check
        %p165 = pneg %p79
      $region18: #{resblock_forward.1} parent=11 // pred_check_branch
        %167 = sbr.rel (%p165) target = $region20
      $region19: #{resblock_forward.1} parent=11 // pred_region
        _
      $region20: #{resblock_forward.1} parent=11 // pred_fallthru
        _
      // Predicated region
      $region21: #{resblock_forward.1} parent=11 // pred_check
        %p168 = pneg %p100
      $region22: #{resblock_forward.1} parent=11 // pred_check_branch
        %170 = sbr.rel (%p168) target = $region24
      $region23: #{resblock_forward.1} parent=11 // pred_region
        _
      $region24: #{resblock_forward.1} parent=11 // pred_fallthru
        _
      // Predicated region
      $region25: #{resblock_forward.1} parent=11 // pred_check
        %p171 = pneg %p121
      $region26: #{resblock_forward.1} parent=11 // pred_check_branch
        %173 = sbr.rel (%p171) target = $region28
      $region27: #{resblock_forward.1} parent=11 // pred_region
        _
      $region28: #{resblock_forward.1} parent=11 // pred_fallthru
        _
    $region12: #{resblock_forward.1} parent=5 // pred_fallthru
      _
    %p174 = scmp.lt.s32.totalorder %s11, 2
    // Predicated region
    $region29: #{resblock_forward.1} parent=5 // pred_check
      %p175 = pneg %p174
    $region30: #{resblock_forward.1} parent=5 // pred_check_branch
      %177 = sbr.rel (%p175) target = $region32
    $region31: #{resblock_forward.1} parent=5 // pred_region
      // Predicated region
      $region33: #{resblock_forward.1} parent=31 // pred_check
        %p178 = pneg %p31
      $region34: #{resblock_forward.1} parent=31 // pred_check_branch
        %180 = sbr.rel (%p178) target = $region36
      $region35: #{resblock_forward.1} parent=31 // pred_region
        %p181 = scmp.lt.s32.totalorder %s11, 1
        %s182 = scalar_select %p181, %s11, 1
        %s183 = smul.addr %s182, 2
        %s184 = smul.addr %s183, 4
        %s185 = scalar_lea.vmem %s0, %s184
      $region36: #{resblock_forward.1} parent=31 // pred_fallthru
        _
    $region32: #{resblock_forward.1} parent=5 // pred_fallthru
      _
    %p186 = scmp.le.s32.totalorder 1, %s11
    %p187 = scmp.lt.s32.totalorder %s11, 3
    %p188 = pnand %p186, %p187
    %p189 = pneg %p188
    // Predicated region
    $region37: #{resblock_forward.1} parent=5 // pred_check
      _
    $region38: #{resblock_forward.1} parent=5 // pred_check_branch
      %191 = sbr.rel (%p188) target = $region40
    $region39: #{resblock_forward.1} parent=5 // pred_region
      %s192 = ssub.s32 %s11, 1
      %p193 = scmp.lt.s32.totalorder %s16, 1
      %s194 = scalar_select %p193, %s16, 1
      %s195 = smul.addr %s194, 2
      %s196 = smul.addr %s195, 4
      %s197 = scalar_lea.vmem %s0, %s196
      %p198 = pneg %p37
      %p199 = pneg %p34
      %p200 = pneg %p58
      %p201 = pneg %p55
      %p202 = pneg %p79
      %p203 = pneg %p76
      %p204 = pneg %p100
      %p205 = pneg %p97
      %p206 = pneg %p121
      %p207 = pneg %p118
      %p208 = pneg %p147
      %p209 = pneg %p144
      %p210 = scmp.lt.s32.totalorder %s16, 1
      %s211 = scalar_select %p210, %s16, 1
      %s212 = smul.addr %s211, 2
      %s213 = smul.addr %s212, 4
      %s214 = scalar_lea.vmem %s5, %s213
      %p215 = scmp.lt.s32.totalorder %s16, 1
      %s216 = scalar_select %p215, %s16, 1
      %s217 = smul.addr %s216, 2
      %s218 = smul.addr %s217, 4
      %s219 = scalar_lea.vmem %s0, %s218
      %p220 = scmp.lt.s32.totalorder %s16, 1
      %s221 = scalar_select %p220, %s16, 1
      %s222 = smul.addr %s221, 2
      %s223 = smul.addr %s222, 4
      %s224 = scalar_lea.vmem %s5, %s223
      %v226 = vld [vmem:[%s219] sm:$0xff]
      %vm227 = vcmask 1041408
      %vm228 = vcmask 1043458
      %vm229 = vmor %vm228, %vm227
      %vm230 = vcmask 1045508
      %vm231 = vmor %vm230, %vm229
      %vm232 = vcmask 408582
      %vm233 = vmor %vm232, %vm231
      %234 = vst.msk [vmem:[#allocation2] sm:$0xff] %vm233, 0
      %v235 = vpack.c.bf16 %v226, %v226
      %v238 = vunpack.c.l.s4 1983009808
      %v239 = vunpack.c.0.s8 %v238
      %v240 = vlaneseq
      %v241 = vshrl.u32 %v240, 7
      %v242 = vsub.s32 %v239, %v241
      %v243 = vrot.slane %v235, %v242
      %244 = vrot.lane.b32.xlu0 %v243, 25
      %v245 = vpop.permute.xlu0 %244
      %vm247 = vcmask 328904
      %248 = vst.msk [vmem:[#allocation2] sm:$0x3] %vm247, %v245
      %249 = vrot.lane.b32.xlu0 %v243, 33
      %v250 = vpop.permute.xlu0 %249
      %vm252 = vcmask 525704
      %253 = vst.msk [vmem:[#allocation2] sm:$0x3] %vm252, %v250
      %254 = vrot.lane.b32.xlu0 %v243, 41
      %v255 = vpop.permute.xlu0 %254
      %vm257 = vcmask 722504
      %258 = vst.msk [vmem:[#allocation2] sm:$0x3] %vm257, %v255
      %259 = vrot.lane.b32.xlu0 %v243, 49
      %v260 = vpop.permute.xlu0 %259
      %vm262 = vcmask 919304
      %263 = vst.msk [vmem:[#allocation2] sm:$0x3] %vm262, %v260
      %264 = vrot.lane.b32.xlu0 %v243, 57
      %v265 = vpop.permute.xlu0 %264
      %v266 = vrot.slane %v265, 6
      %vm267 = vcmask 465920
      %v268 = vsel %vm267, %v266, %v265
      %vm270 = vcmask 1042376
      %vm271 = vcmask 68610
      %vm272 = vmor %vm271, %vm270
      %273 = vst.msk [vmem:[#allocation2] sm:$0xf] %vm272, %v268
      %274 = vrot.lane.b32.xlu0 %v243, 65
      %v275 = vpop.permute.xlu0 %274
      %vm277 = vcmask 263304
      %278 = vst.msk [vmem:[#allocation2 + $0x2] sm:$0x3] %vm277, %v275
      %279 = vrot.lane.b32.xlu0 %v243, 73
      %v280 = vpop.permute.xlu0 %279
      %vm282 = vcmask 460104
      %283 = vst.msk [vmem:[#allocation2 + $0x2] sm:$0x3] %vm282, %v280
      %284 = vrot.lane.b32.xlu0 %v243, 81
      %v285 = vpop.permute.xlu0 %284
      %vm287 = vcmask 656904
      %288 = vst.msk [vmem:[#allocation2 + $0x2] sm:$0x3] %vm287, %v285
      %v290 = vcombine.high %v226, %v226
      %v292 = vpack.c.bf16 %v290, %v290
      %v295 = vunpack.c.l.s4 1983009808
      %v296 = vunpack.c.0.s8 %v295
      %v297 = vlaneseq
      %v298 = vshrl.u32 %v297, 7
      %v299 = vsub.s32 %v296, %v298
      %v300 = vrot.slane %v292, %v299
      %301 = vrot.lane.b32.xlu0 %v300, 89
      %v302 = vpop.permute.xlu0 %301
      %vm304 = vcmask 853704
      %305 = vst.msk [vmem:[#allocation2 + $0x2] sm:$0x3] %vm304, %v302
      %306 = vrot.lane.b32.xlu0 %v290, 112
      %v307 = vpop.permute.xlu0 %306
      %v309 = vpack.c.bf16 %v307, %v307
      %v312 = vunpack.c.l.s4 1983009808
      %v313 = vunpack.c.0.s8 %v312
      %v314 = vlaneseq
      %v315 = vshrl.u32 %v314, 7
      %v316 = vsub.s32 %v313, %v315
      %v317 = vrot.slane %v309, %v316
      %318 = vrot.lane.b32.xlu0 %v317, 113
      %v319 = vpop.permute.xlu0 %318
      %v320 = vrot.slane %v319, 6
      %vm321 = vcmask 924672
      %v322 = vsel %vm321, %v320, %v319
      %vm324 = vcmask 1042312
      %vm325 = vcmask 3074
      %vm326 = vmor %vm325, %vm324
      %327 = vst.msk [vmem:[#allocation2 + $0x2] sm:$0xf] %vm326, %v322
      %328 = vrot.lane.b32.xlu0 %v290, 96
      %v329 = vpop.permute.xlu0 %328
      %v331 = vpack.c.bf16 %v329, %v329
      %v334 = vunpack.c.l.s4 1983009808
      %v335 = vunpack.c.0.s8 %v334
      %v336 = vlaneseq
      %v337 = vshrl.u32 %v336, 7
      %v338 = vsub.s32 %v335, %v337
      %v339 = vrot.slane %v331, %v338
      %340 = vrot.lane.b32.xlu0 %v339, 9
      %v341 = vpop.permute.xlu0 %340
      %vm343 = vcmask 197704
      %344 = vst.msk [vmem:[#allocation2 + $0x4] sm:$0x3] %vm343, %v341
      %345 = vrot.lane.b32.xlu0 %v290, 80
      %v346 = vpop.permute.xlu0 %345
      %v348 = vpack.c.bf16 %v346, %v346
      %v351 = vunpack.c.l.s4 1983009808
      %v352 = vunpack.c.0.s8 %v351
      %v353 = vlaneseq
      %v354 = vshrl.u32 %v353, 7
      %v355 = vsub.s32 %v352, %v354
      %v356 = vrot.slane %v348, %v355
      %357 = vrot.lane.b32.xlu0 %v356, 33
      %v358 = vpop.permute.xlu0 %357
      %vm360 = vcmask 394504
      %361 = vst.msk [vmem:[#allocation2 + $0x4] sm:$0x3] %vm360, %v358
      %362 = vrot.lane.b32.xlu0 %v290, 64
      %v363 = vpop.permute.xlu0 %362
      %v365 = vpack.c.bf16 %v363, %v363
      %v368 = vunpack.c.l.s4 1983009808
      %v369 = vunpack.c.0.s8 %v368
      %v370 = vlaneseq
      %v371 = vshrl.u32 %v370, 7
      %v372 = vsub.s32 %v369, %v371
      %v373 = vrot.slane %v365, %v372
      %374 = vrot.lane.b32.xlu0 %v373, 57
      %v375 = vpop.permute.xlu0 %374
      %vm377 = vcmask 591304
      %378 = vst.msk [vmem:[#allocation2 + $0x4] sm:$0x3] %vm377, %v375
      %379 = vrot.lane.b32.xlu0 %v290, 48
      %v380 = vpop.permute.xlu0 %379
      %v382 = vpack.c.bf16 %v380, %v380
      %v385 = vunpack.c.l.s4 1983009808
      %v386 = vunpack.c.0.s8 %v385
      %v387 = vlaneseq
      %v388 = vshrl.u32 %v387, 7
      %v389 = vsub.s32 %v386, %v388
      %v390 = vrot.slane %v382, %v389
      %391 = vrot.lane.b32.xlu0 %v390, 81
      %v392 = vpop.permute.xlu0 %391
      %vm394 = vcmask 788104
      %395 = vst.msk [vmem:[#allocation2 + $0x4] sm:$0x3] %vm394, %v392
      %396 = vrot.lane.b32.xlu0 %v290, 32
      %v397 = vpop.permute.xlu0 %396
      %v399 = vpack.c.bf16 %v397, %v397
      %v402 = vunpack.c.l.s4 1983009808
      %v403 = vunpack.c.0.s8 %v402
      %v404 = vlaneseq
      %v405 = vshrl.u32 %v404, 7
      %v406 = vsub.s32 %v403, %v405
      %v407 = vrot.slane %v399, %v406
      %408 = vrot.lane.b32.xlu0 %v407, 105
      %v409 = vpop.permute.xlu0 %408
      %vm411 = vcmask 984904
      %412 = vst.msk [vmem:[#allocation2 + $0x4] sm:$0x3] %vm411, %v409
      %413 = vrot.lane.b32.xlu0 %v290, 16
      %v414 = vpop.permute.xlu0 %413
      %v416 = vpack.c.bf16 %v414, %v414
      %v419 = vunpack.c.l.s4 1983009808
      %v420 = vunpack.c.0.s8 %v419
      %v421 = vlaneseq
      %v422 = vshrl.u32 %v421, 7
      %v423 = vsub.s32 %v420, %v422
      %v424 = vrot.slane %v416, %v423
      %425 = vrot.lane.b32.xlu0 %v424, 1
      %v426 = vpop.permute.xlu0 %425
      %vm428 = vcmask 132104
      %429 = vst.msk [vmem:[#allocation2 + $0x6] sm:$0x3] %vm428, %v426
      %v430 = vld [vmem:[%s1] sm:$0xf]
      %v431 = vld [vmem:[#allocation2] sm:$0x3f]
      %s432 = scalar_lea.vmem %s1, 4
      %v433 = vld [vmem:[%s432] sm:$0xf]
      %v434 = vld [vmem:[#allocation2] sm:$0xff]
      %v436 = vcombine.high %v434, %v434
      %v438 = vunpack.c.l.s4 1983009808
      %v439 = vunpack.c.0.s8 %v438
      %v440 = vlaneseq
      %v441 = vshrl.u32 %v440, 7
      %v442 = vsub.s32 %v439, %v441
      %v443 = vrot.slane %v434, %v442
      %v445 = vunpack.c.l.s4 1983009808
      %v446 = vunpack.c.0.s8 %v445
      %v447 = vlaneseq
      %v448 = vshrl.u32 %v447, 7
      %v449 = vsub.s32 %v446, %v448
      %v450 = vrot.slane %v436, %v449
      %v451 = vcombine.high %v443, %v443
      %v452 = vcombine.high %v450, %v450
      %453 = vrot.lane.b32.xlu0 %v443, 127
      %v454 = vpop.permute.xlu0 %453
      %455 = vrot.lane.b32.xlu0 %v451, 127
      %v456 = vpop.permute.xlu0 %455
      %457 = vrot.lane.b32.xlu0 %v450, 127
      %v458 = vpop.permute.xlu0 %457
      %459 = vrot.lane.b32.xlu0 %v452, 127
      %v460 = vpop.permute.xlu0 %459
      %vm461 = vcmask 1039360
      %v462 = vsel %vm461, %v454, %v456
      %v463 = vsel %vm461, %v456, %v458
      %v464 = vsel %vm461, %v458, %v460
      %vm465 = vcmask 31744
      %v467 = vsel %vm465, %v433, 0
      %v470 = vsel %vm227, %v462, 0
      %v473 = vsel %vm227, %v463, 0
      %v476 = vsel %vm227, %v464, 0
      %478 = vmatprep.subr.bf16.mxu0 0
      %479 = vmatpush1.bf16.msra.mxu0 0
      %480 = vmatprep.subr.bf16.mxu0 0
      %481 = vmatpush1.bf16.msra.mxu0 0
      %482 = vmatprep.subr.bf16.mxu0 0
      %483 = vmatpush1.bf16.msra.mxu0 0
      %484 = vmatprep.subr.bf16.mxu0 0
      %485 = vmatpush1.bf16.msra.mxu0 0
      %486 = vmatprep.subr.bf16.mxu0 0
      %487 = vmatpush1.bf16.msra.mxu0 0
      %488 = vmatprep.subr.bf16.mxu0 0
      %489 = vmatpush1.bf16.msra.mxu0 0
      %490 = vmatprep.subr.bf16.mxu0 0
      %491 = vmatpush1.bf16.msra.mxu0 0
      %492 = vmatprep.subr.bf16.mxu0 %v473
      %493 = vmatpush1.bf16.msra.mxu0 %v470
      %494 = vmatprep.subr.bf16.mxu0 0
      %495 = vmatpush2.bf16.msra.mxu0 0
      %496 = vmatprep.subr.bf16.mxu0 0
      %497 = vmatpush2.bf16.msra.mxu0 0
      %498 = vmatprep.subr.bf16.mxu0 0
      %499 = vmatpush2.bf16.msra.mxu0 0
      %500 = vmatprep.subr.bf16.mxu0 0
      %501 = vmatpush2.bf16.msra.mxu0 0
      %502 = vmatprep.subr.bf16.mxu0 0
      %503 = vmatpush2.bf16.msra.mxu0 0
      %504 = vmatprep.subr.bf16.mxu0 0
      %505 = vmatpush2.bf16.msra.mxu0 0
      %506 = vmatprep.subr.bf16.mxu0 0
      %507 = vmatpush2.bf16.msra.mxu0 0
      %508 = vmatprep.subr.bf16.mxu0 0
      %509 = vmatpush2.bf16.msra.mxu0 0
      %510 = vmatprep.mubr.bf16.mxu0 0
      %511 = vmatmul.mubr.bf16.gmra.mxu0 %v467
      %v512 = vpop.f32.mrf.mxu0
      %v513 = vadd.f32 0.0, %v512
      %v514 = vpop.f32.mrf.mxu0
      %v515 = vadd.f32 0.0, %v514
      %v516 = vpop.f32.mrf.mxu0
      %v517 = vpop.f32.mrf.mxu0
      %518 = vdwg.mxu0
      %519 = vmatprep.subr.bf16.mxu0 0
      %520 = vmatpush1.bf16.msra.mxu0 0
      %521 = vmatprep.subr.bf16.mxu0 0
      %522 = vmatpush1.bf16.msra.mxu0 0
      %523 = vmatprep.subr.bf16.mxu0 0
      %524 = vmatpush1.bf16.msra.mxu0 0
      %525 = vmatprep.subr.bf16.mxu0 0
      %526 = vmatpush1.bf16.msra.mxu0 0
      %527 = vmatprep.subr.bf16.mxu0 0
      %528 = vmatpush1.bf16.msra.mxu0 0
      %529 = vmatprep.subr.bf16.mxu0 0
      %530 = vmatpush1.bf16.msra.mxu0 0
      %531 = vmatprep.subr.bf16.mxu0 0
      %532 = vmatpush1.bf16.msra.mxu0 0
      %533 = vmatprep.subr.bf16.mxu0 0
      %534 = vmatpush1.bf16.msra.mxu0 %v476
      %535 = vmatprep.subr.bf16.mxu0 0
      %536 = vmatpush2.bf16.msra.mxu0 0
      %537 = vmatprep.subr.bf16.mxu0 0
      %538 = vmatpush2.bf16.msra.mxu0 0
      %539 = vmatprep.subr.bf16.mxu0 0
      %540 = vmatpush2.bf16.msra.mxu0 0
      %541 = vmatprep.subr.bf16.mxu0 0
      %542 = vmatpush2.bf16.msra.mxu0 0
      %543 = vmatprep.subr.bf16.mxu0 0
      %544 = vmatpush2.bf16.msra.mxu0 0
      %545 = vmatprep.subr.bf16.mxu0 0
      %546 = vmatpush2.bf16.msra.mxu0 0
      %547 = vmatprep.subr.bf16.mxu0 0
      %548 = vmatpush2.bf16.msra.mxu0 0
      %549 = vmatprep.subr.bf16.mxu0 0
      %550 = vmatpush2.bf16.msra.mxu0 0
      %551 = vmatprep.mubr.bf16.mxu0 0
      %552 = vmatmul.mubr.bf16.gmra.mxu0 %v467
      %v553 = vpop.f32.mrf.mxu0
      %v554 = vadd.f32 0.0, %v553
      %v555 = vpop.f32.mrf.mxu0
      %v556 = vpop.f32.mrf.mxu0
      %v557 = vpop.f32.mrf.mxu0
      %558 = vdwg.mxu0
      %v560 = vcombine.high %v431, %v431
      %v562 = vunpack.c.l.s4 1983009808
      %v563 = vunpack.c.0.s8 %v562
      %v564 = vlaneseq
      %v565 = vshrl.u32 %v564, 7
      %v566 = vsub.s32 %v563, %v565
      %v567 = vrot.slane %v431, %v566
      %v569 = vunpack.c.l.s4 1983009808
      %v570 = vunpack.c.0.s8 %v569
      %v571 = vlaneseq
      %v572 = vshrl.u32 %v571, 7
      %v573 = vsub.s32 %v570, %v572
      %v574 = vrot.slane %v560, %v573
      %v575 = vcombine.high %v567, %v567
      %v577 = vsel %vm465, %v430, 0
      %v580 = vsel %vm227, %v567, 0
      %v583 = vsel %vm227, %v575, 0
      %v586 = vsel %vm227, %v574, 0
      %588 = vmatprep.subr.bf16.mxu0 0
      %589 = vmatpush1.bf16.msra.mxu0 0
      %590 = vmatprep.subr.bf16.mxu0 0
      %591 = vmatpush1.bf16.msra.mxu0 0
      %592 = vmatprep.subr.bf16.mxu0 0
      %593 = vmatpush1.bf16.msra.mxu0 0
      %594 = vmatprep.subr.bf16.mxu0 0
      %595 = vmatpush1.bf16.msra.mxu0 0
      %596 = vmatprep.subr.bf16.mxu0 0
      %597 = vmatpush1.bf16.msra.mxu0 0
      %598 = vmatprep.subr.bf16.mxu0 0
      %599 = vmatpush1.bf16.msra.mxu0 0
      %600 = vmatprep.subr.bf16.mxu0 0
      %601 = vmatpush1.bf16.msra.mxu0 0
      %602 = vmatprep.subr.bf16.mxu0 %v583
      %603 = vmatpush1.bf16.msra.mxu0 %v580
      %604 = vmatprep.subr.bf16.mxu0 0
      %605 = vmatpush2.bf16.msra.mxu0 0
      %606 = vmatprep.subr.bf16.mxu0 0
      %607 = vmatpush2.bf16.msra.mxu0 0
      %608 = vmatprep.subr.bf16.mxu0 0
      %609 = vmatpush2.bf16.msra.mxu0 0
      %610 = vmatprep.subr.bf16.mxu0 0
      %611 = vmatpush2.bf16.msra.mxu0 0
      %612 = vmatprep.subr.bf16.mxu0 0
      %613 = vmatpush2.bf16.msra.mxu0 0
      %614 = vmatprep.subr.bf16.mxu0 0
      %615 = vmatpush2.bf16.msra.mxu0 0
      %616 = vmatprep.subr.bf16.mxu0 0
      %617 = vmatpush2.bf16.msra.mxu0 0
      %618 = vmatprep.subr.bf16.mxu0 0
      %619 = vmatpush2.bf16.msra.mxu0 0
      %620 = vmatprep.mubr.bf16.mxu0 0
      %621 = vmatmul.mubr.bf16.gmra.mxu0 %v577
      %v622 = vpop.f32.mrf.mxu0
      %v623 = vadd.f32 %v513, %v622
      %v624 = vpop.f32.mrf.mxu0
      %v625 = vadd.f32 %v515, %v624
      %v626 = vpop.f32.mrf.mxu0
      %v627 = vpop.f32.mrf.mxu0
      %628 = vdwg.mxu0
      %629 = vmatprep.subr.bf16.mxu0 0
      %630 = vmatpush1.bf16.msra.mxu0 0
      %631 = vmatprep.subr.bf16.mxu0 0
      %632 = vmatpush1.bf16.msra.mxu0 0
      %633 = vmatprep.subr.bf16.mxu0 0
      %634 = vmatpush1.bf16.msra.mxu0 0
      %635 = vmatprep.subr.bf16.mxu0 0
      %636 = vmatpush1.bf16.msra.mxu0 0
      %637 = vmatprep.subr.bf16.mxu0 0
      %638 = vmatpush1.bf16.msra.mxu0 0
      %639 = vmatprep.subr.bf16.mxu0 0
      %640 = vmatpush1.bf16.msra.mxu0 0
      %641 = vmatprep.subr.bf16.mxu0 0
      %642 = vmatpush1.bf16.msra.mxu0 0
      %643 = vmatprep.subr.bf16.mxu0 0
      %644 = vmatpush1.bf16.msra.mxu0 %v586
      %645 = vmatprep.subr.bf16.mxu0 0
      %646 = vmatpush2.bf16.msra.mxu0 0
      %647 = vmatprep.subr.bf16.mxu0 0
      %648 = vmatpush2.bf16.msra.mxu0 0
      %649 = vmatprep.subr.bf16.mxu0 0
      %650 = vmatpush2.bf16.msra.mxu0 0
      %651 = vmatprep.subr.bf16.mxu0 0
      %652 = vmatpush2.bf16.msra.mxu0 0
      %653 = vmatprep.subr.bf16.mxu0 0
      %654 = vmatpush2.bf16.msra.mxu0 0
      %655 = vmatprep.subr.bf16.mxu0 0
      %656 = vmatpush2.bf16.msra.mxu0 0
      %657 = vmatprep.subr.bf16.mxu0 0
      %658 = vmatpush2.bf16.msra.mxu0 0
      %659 = vmatprep.subr.bf16.mxu0 0
      %660 = vmatpush2.bf16.msra.mxu0 0
      %661 = vmatprep.mubr.bf16.mxu0 0
      %662 = vmatmul.mubr.bf16.gmra.mxu0 %v577
      %v663 = vpop.f32.mrf.mxu0
      %v664 = vadd.f32 %v554, %v663
      %v665 = vpop.f32.mrf.mxu0
      %v666 = vpop.f32.mrf.mxu0
      %v667 = vpop.f32.mrf.mxu0
      %668 = vdwg.mxu0
      %s669 = scalar_lea.vmem %s1, 8
      %v670 = vld [vmem:[%s669] sm:$0xf]
      %v671 = vld [vmem:[#allocation2] sm:$0xff]
      %v673 = vcombine.high %v671, %v671
      %v675 = vunpack.c.l.s4 1983009808
      %v676 = vunpack.c.0.s8 %v675
      %v677 = vlaneseq
      %v678 = vshrl.u32 %v677, 7
      %v679 = vsub.s32 %v676, %v678
      %v680 = vrot.slane %v671, %v679
      %v682 = vunpack.c.l.s4 1983009808
      %v683 = vunpack.c.0.s8 %v682
      %v684 = vlaneseq
      %v685 = vshrl.u32 %v684, 7
      %v686 = vsub.s32 %v683, %v685
      %v687 = vrot.slane %v673, %v686
      %v688 = vcombine.high %v680, %v680
      %v689 = vcombine.high %v687, %v687
      %690 = vrot.lane.b32.xlu0 %v680, 126
      %v691 = vpop.permute.xlu0 %690
      %692 = vrot.lane.b32.xlu0 %v688, 126
      %v693 = vpop.permute.xlu0 %692
      %694 = vrot.lane.b32.xlu0 %v687, 126
      %v695 = vpop.permute.xlu0 %694
      %696 = vrot.lane.b32.xlu0 %v689, 126
      %v697 = vpop.permute.xlu0 %696
      %vm698 = vcmask 1031168
      %v699 = vsel %vm698, %v691, %v693
      %v700 = vsel %vm698, %v693, %v695
      %v701 = vsel %vm698, %v695, %v697
      %v703 = vsel %vm465, %v670, 0
      %v706 = vsel %vm227, %v699, 0
      %v709 = vsel %vm227, %v700, 0
      %v712 = vsel %vm227, %v701, 0
      %714 = vmatprep.subr.bf16.mxu0 0
      %715 = vmatpush1.bf16.msra.mxu0 0
      %716 = vmatprep.subr.bf16.mxu0 0
      %717 = vmatpush1.bf16.msra.mxu0 0
      %718 = vmatprep.subr.bf16.mxu0 0
      %719 = vmatpush1.bf16.msra.mxu0 0
      %720 = vmatprep.subr.bf16.mxu0 0
      %721 = vmatpush1.bf16.msra.mxu0 0
      %722 = vmatprep.subr.bf16.mxu0 0
      %723 = vmatpush1.bf16.msra.mxu0 0
      %724 = vmatprep.subr.bf16.mxu0 0
      %725 = vmatpush1.bf16.msra.mxu0 0
      %726 = vmatprep.subr.bf16.mxu0 0
      %727 = vmatpush1.bf16.msra.mxu0 0
      %728 = vmatprep.subr.bf16.mxu0 %v709
      %729 = vmatpush1.bf16.msra.mxu0 %v706
      %730 = vmatprep.subr.bf16.mxu0 0
      %731 = vmatpush2.bf16.msra.mxu0 0
      %732 = vmatprep.subr.bf16.mxu0 0
      %733 = vmatpush2.bf16.msra.mxu0 0
      %734 = vmatprep.subr.bf16.mxu0 0
      %735 = vmatpush2.bf16.msra.mxu0 0
      %736 = vmatprep.subr.bf16.mxu0 0
      %737 = vmatpush2.bf16.msra.mxu0 0
      %738 = vmatprep.subr.bf16.mxu0 0
      %739 = vmatpush2.bf16.msra.mxu0 0
      %740 = vmatprep.subr.bf16.mxu0 0
      %741 = vmatpush2.bf16.msra.mxu0 0
      %742 = vmatprep.subr.bf16.mxu0 0
      %743 = vmatpush2.bf16.msra.mxu0 0
      %744 = vmatprep.subr.bf16.mxu0 0
      %745 = vmatpush2.bf16.msra.mxu0 0
      %746 = vmatprep.mubr.bf16.mxu0 0
      %747 = vmatmul.mubr.bf16.gmra.mxu0 %v703
      %v748 = vpop.f32.mrf.mxu0
      %v749 = vadd.f32 0.0, %v748
      %v750 = vpop.f32.mrf.mxu0
      %v751 = vadd.f32 0.0, %v750
      %v752 = vpop.f32.mrf.mxu0
      %v753 = vpop.f32.mrf.mxu0
      %754 = vdwg.mxu0
      %755 = vmatprep.subr.bf16.mxu0 0
      %756 = vmatpush1.bf16.msra.mxu0 0
      %757 = vmatprep.subr.bf16.mxu0 0
      %758 = vmatpush1.bf16.msra.mxu0 0
      %759 = vmatprep.subr.bf16.mxu0 0
      %760 = vmatpush1.bf16.msra.mxu0 0
      %761 = vmatprep.subr.bf16.mxu0 0
      %762 = vmatpush1.bf16.msra.mxu0 0
      %763 = vmatprep.subr.bf16.mxu0 0
      %764 = vmatpush1.bf16.msra.mxu0 0
      %765 = vmatprep.subr.bf16.mxu0 0
      %766 = vmatpush1.bf16.msra.mxu0 0
      %767 = vmatprep.subr.bf16.mxu0 0
      %768 = vmatpush1.bf16.msra.mxu0 0
      %769 = vmatprep.subr.bf16.mxu0 0
      %770 = vmatpush1.bf16.msra.mxu0 %v712
      %771 = vmatprep.subr.bf16.mxu0 0
      %772 = vmatpush2.bf16.msra.mxu0 0
      %773 = vmatprep.subr.bf16.mxu0 0
      %774 = vmatpush2.bf16.msra.mxu0 0
      %775 = vmatprep.subr.bf16.mxu0 0
      %776 = vmatpush2.bf16.msra.mxu0 0
      %777 = vmatprep.subr.bf16.mxu0 0
      %778 = vmatpush2.bf16.msra.mxu0 0
      %779 = vmatprep.subr.bf16.mxu0 0
      %780 = vmatpush2.bf16.msra.mxu0 0
      %781 = vmatprep.subr.bf16.mxu0 0
      %782 = vmatpush2.bf16.msra.mxu0 0
      %783 = vmatprep.subr.bf16.mxu0 0
      %784 = vmatpush2.bf16.msra.mxu0 0
      %785 = vmatprep.subr.bf16.mxu0 0
      %786 = vmatpush2.bf16.msra.mxu0 0
      %787 = vmatprep.mubr.bf16.mxu0 0
      %788 = vmatmul.mubr.bf16.gmra.mxu0 %v703
      %v789 = vpop.f32.mrf.mxu0
      %v790 = vadd.f32 0.0, %v789
      %v791 = vpop.f32.mrf.mxu0
      %v792 = vpop.f32.mrf.mxu0
      %v793 = vpop.f32.mrf.mxu0
      %794 = vdwg.mxu0
      %v795 = vadd.f32 %v623, %v749
      %v796 = vadd.f32 %v625, %v751
      %v797 = vadd.f32 %v664, %v790
      %s798 = scalar_lea.vmem %s1, 12
      %v799 = vld [vmem:[%s798] sm:$0xf]
      %v800 = vld [vmem:[#allocation2] sm:$0xff]
      %v802 = vcombine.high %v800, %v800
      %v804 = vunpack.c.l.s4 1983009808
      %v805 = vunpack.c.0.s8 %v804
      %v806 = vlaneseq
      %v807 = vshrl.u32 %v806, 7
      %v808 = vsub.s32 %v805, %v807
      %v809 = vrot.slane %v800, %v808
      %v811 = vunpack.c.l.s4 1983009808
      %v812 = vunpack.c.0.s8 %v811
      %v813 = vlaneseq
      %v814 = vshrl.u32 %v813, 7
      %v815 = vsub.s32 %v812, %v814
      %v816 = vrot.slane %v802, %v815
      %v817 = vcombine.high %v809, %v809
      %v818 = vcombine.high %v816, %v816
      %819 = vrot.lane.b32.xlu0 %v809, 104
      %v820 = vpop.permute.xlu0 %819
      %821 = vrot.lane.b32.xlu0 %v817, 104
      %v822 = vpop.permute.xlu0 %821
      %823 = vrot.lane.b32.xlu0 %v816, 104
      %v824 = vpop.permute.xlu0 %823
      %825 = vrot.lane.b32.xlu0 %v818, 104
      %v826 = vpop.permute.xlu0 %825
      %vm827 = vcmask 850944
      %v828 = vsel %vm827, %v820, %v822
      %v829 = vsel %vm827, %v822, %v824
      %v830 = vsel %vm827, %v824, %v826
      %v832 = vsel %vm465, %v799, 0
      %v835 = vsel %vm227, %v828, 0
      %v838 = vsel %vm227, %v829, 0
      %v841 = vsel %vm227, %v830, 0
      %843 = vmatprep.subr.bf16.mxu0 0
      %844 = vmatpush1.bf16.msra.mxu0 0
      %845 = vmatprep.subr.bf16.mxu0 0
      %846 = vmatpush1.bf16.msra.mxu0 0
      %847 = vmatprep.subr.bf16.mxu0 0
      %848 = vmatpush1.bf16.msra.mxu0 0
      %849 = vmatprep.subr.bf16.mxu0 0
      %850 = vmatpush1.bf16.msra.mxu0 0
      %851 = vmatprep.subr.bf16.mxu0 0
      %852 = vmatpush1.bf16.msra.mxu0 0
      %853 = vmatprep.subr.bf16.mxu0 0
      %854 = vmatpush1.bf16.msra.mxu0 0
      %855 = vmatprep.subr.bf16.mxu0 0
      %856 = vmatpush1.bf16.msra.mxu0 0
      %857 = vmatprep.subr.bf16.mxu0 %v838
      %858 = vmatpush1.bf16.msra.mxu0 %v835
      %859 = vmatprep.subr.bf16.mxu0 0
      %860 = vmatpush2.bf16.msra.mxu0 0
      %861 = vmatprep.subr.bf16.mxu0 0
      %862 = vmatpush2.bf16.msra.mxu0 0
      %863 = vmatprep.subr.bf16.mxu0 0
      %864 = vmatpush2.bf16.msra.mxu0 0
      %865 = vmatprep.subr.bf16.mxu0 0
      %866 = vmatpush2.bf16.msra.mxu0 0
      %867 = vmatprep.subr.bf16.mxu0 0
      %868 = vmatpush2.bf16.msra.mxu0 0
      %869 = vmatprep.subr.bf16.mxu0 0
      %870 = vmatpush2.bf16.msra.mxu0 0
      %871 = vmatprep.subr.bf16.mxu0 0
      %872 = vmatpush2.bf16.msra.mxu0 0
      %873 = vmatprep.subr.bf16.mxu0 0
      %874 = vmatpush2.bf16.msra.mxu0 0
      %875 = vmatprep.mubr.bf16.mxu0 0
      %876 = vmatmul.mubr.bf16.gmra.mxu0 %v832
      %v877 = vpop.f32.mrf.mxu0
      %v878 = vadd.f32 0.0, %v877
      %v879 = vpop.f32.mrf.mxu0
      %v880 = vadd.f32 0.0, %v879
      %v881 = vpop.f32.mrf.mxu0
      %v882 = vpop.f32.mrf.mxu0
      %883 = vdwg.mxu0
      %884 = vmatprep.subr.bf16.mxu0 0
      %885 = vmatpush1.bf16.msra.mxu0 0
      %886 = vmatprep.subr.bf16.mxu0 0
      %887 = vmatpush1.bf16.msra.mxu0 0
      %888 = vmatprep.subr.bf16.mxu0 0
      %889 = vmatpush1.bf16.msra.mxu0 0
      %890 = vmatprep.subr.bf16.mxu0 0
      %891 = vmatpush1.bf16.msra.mxu0 0
      %892 = vmatprep.subr.bf16.mxu0 0
      %893 = vmatpush1.bf16.msra.mxu0 0
      %894 = vmatprep.subr.bf16.mxu0 0
      %895 = vmatpush1.bf16.msra.mxu0 0
      %896 = vmatprep.subr.bf16.mxu0 0
      %897 = vmatpush1.bf16.msra.mxu0 0
      %898 = vmatprep.subr.bf16.mxu0 0
      %899 = vmatpush1.bf16.msra.mxu0 %v841
      %900 = vmatprep.subr.bf16.mxu0 0
      %901 = vmatpush2.bf16.msra.mxu0 0
      %902 = vmatprep.subr.bf16.mxu0 0
      %903 = vmatpush2.bf16.msra.mxu0 0
      %904 = vmatprep.subr.bf16.mxu0 0
      %905 = vmatpush2.bf16.msra.mxu0 0
      %906 = vmatprep.subr.bf16.mxu0 0
      %907 = vmatpush2.bf16.msra.mxu0 0
      %908 = vmatprep.subr.bf16.mxu0 0
      %909 = vmatpush2.bf16.msra.mxu0 0
      %910 = vmatprep.subr.bf16.mxu0 0
      %911 = vmatpush2.bf16.msra.mxu0 0
      %912 = vmatprep.subr.bf16.mxu0 0
      %913 = vmatpush2.bf16.msra.mxu0 0
      %914 = vmatprep.subr.bf16.mxu0 0
      %915 = vmatpush2.bf16.msra.mxu0 0
      %916 = vmatprep.mubr.bf16.mxu0 0
      %917 = vmatmul.mubr.bf16.gmra.mxu0 %v832
      %v918 = vpop.f32.mrf.mxu0
      %v919 = vadd.f32 0.0, %v918
      %v920 = vpop.f32.mrf.mxu0
      %v921 = vpop.f32.mrf.mxu0
      %v922 = vpop.f32.mrf.mxu0
      %923 = vdwg.mxu0
      %v924 = vadd.f32 %v795, %v878
      %v925 = vadd.f32 %v796, %v880
      %v926 = vadd.f32 %v797, %v919
      %s927 = scalar_lea.vmem %s1, 16
      %v928 = vld [vmem:[%s927] sm:$0xf]
      %v929 = vld [vmem:[#allocation2] sm:$0xff]
      %v931 = vcombine.high %v929, %v929
      %v933 = vunpack.c.l.s4 1983009808
      %v934 = vunpack.c.0.s8 %v933
      %v935 = vlaneseq
      %v936 = vshrl.u32 %v935, 7
      %v937 = vsub.s32 %v934, %v936
      %v938 = vrot.slane %v929, %v937
      %v940 = vunpack.c.l.s4 1983009808
      %v941 = vunpack.c.0.s8 %v940
      %v942 = vlaneseq
      %v943 = vshrl.u32 %v942, 7
      %v944 = vsub.s32 %v941, %v943
      %v945 = vrot.slane %v931, %v944
      %v946 = vcombine.high %v938, %v938
      %v947 = vcombine.high %v945, %v945
      %948 = vrot.lane.b32.xlu0 %v938, 103
      %v949 = vpop.permute.xlu0 %948
      %950 = vrot.lane.b32.xlu0 %v946, 103
      %v951 = vpop.permute.xlu0 %950
      %952 = vrot.lane.b32.xlu0 %v945, 103
      %v953 = vpop.permute.xlu0 %952
      %954 = vrot.lane.b32.xlu0 %v947, 103
      %v955 = vpop.permute.xlu0 %954
      %vm956 = vcmask 842752
      %v957 = vsel %vm956, %v949, %v951
      %v958 = vsel %vm956, %v951, %v953
      %v959 = vsel %vm956, %v953, %v955
      %v961 = vsel %vm465, %v928, 0
      %v964 = vsel %vm227, %v957, 0
      %v967 = vsel %vm227, %v958, 0
      %v970 = vsel %vm227, %v959, 0
      %972 = vmatprep.subr.bf16.mxu0 0
      %973 = vmatpush1.bf16.msra.mxu0 0
      %974 = vmatprep.subr.bf16.mxu0 0
      %975 = vmatpush1.bf16.msra.mxu0 0
      %976 = vmatprep.subr.bf16.mxu0 0
      %977 = vmatpush1.bf16.msra.mxu0 0
      %978 = vmatprep.subr.bf16.mxu0 0
      %979 = vmatpush1.bf16.msra.mxu0 0
      %980 = vmatprep.subr.bf16.mxu0 0
      %981 = vmatpush1.bf16.msra.mxu0 0
      %982 = vmatprep.subr.bf16.mxu0 0
      %983 = vmatpush1.bf16.msra.mxu0 0
      %984 = vmatprep.subr.bf16.mxu0 0
      %985 = vmatpush1.bf16.msra.mxu0 0
      %986 = vmatprep.subr.bf16.mxu0 %v967
      %987 = vmatpush1.bf16.msra.mxu0 %v964
      %988 = vmatprep.subr.bf16.mxu0 0
      %989 = vmatpush2.bf16.msra.mxu0 0
      %990 = vmatprep.subr.bf16.mxu0 0
      %991 = vmatpush2.bf16.msra.mxu0 0
      %992 = vmatprep.subr.bf16.mxu0 0
      %993 = vmatpush2.bf16.msra.mxu0 0
      %994 = vmatprep.subr.bf16.mxu0 0
      %995 = vmatpush2.bf16.msra.mxu0 0
      %996 = vmatprep.subr.bf16.mxu0 0
      %997 = vmatpush2.bf16.msra.mxu0 0
      %998 = vmatprep.subr.bf16.mxu0 0
      %999 = vmatpush2.bf16.msra.mxu0 0
      %1000 = vmatprep.subr.bf16.mxu0 0
      %1001 = vmatpush2.bf16.msra.mxu0 0
      %1002 = vmatprep.subr.bf16.mxu0 0
      %1003 = vmatpush2.bf16.msra.mxu0 0
      %1004 = vmatprep.mubr.bf16.mxu0 0
      %1005 = vmatmul.mubr.bf16.gmra.mxu0 %v961
      %v1006 = vpop.f32.mrf.mxu0
      %v1007 = vadd.f32 0.0, %v1006
      %v1008 = vpop.f32.mrf.mxu0
      %v1009 = vadd.f32 0.0, %v1008
      %v1010 = vpop.f32.mrf.mxu0
      %v1011 = vpop.f32.mrf.mxu0
      %1012 = vdwg.mxu0
      %1013 = vmatprep.subr.bf16.mxu0 0
      %1014 = vmatpush1.bf16.msra.mxu0 0
      %1015 = vmatprep.subr.bf16.mxu0 0
      %1016 = vmatpush1.bf16.msra.mxu0 0
      %1017 = vmatprep.subr.bf16.mxu0 0
      %1018 = vmatpush1.bf16.msra.mxu0 0
      %1019 = vmatprep.subr.bf16.mxu0 0
      %1020 = vmatpush1.bf16.msra.mxu0 0
      %1021 = vmatprep.subr.bf16.mxu0 0
      %1022 = vmatpush1.bf16.msra.mxu0 0
      %1023 = vmatprep.subr.bf16.mxu0 0
      %1024 = vmatpush1.bf16.msra.mxu0 0
      %1025 = vmatprep.subr.bf16.mxu0 0
      %1026 = vmatpush1.bf16.msra.mxu0 0
      %1027 = vmatprep.subr.bf16.mxu0 0
      %1028 = vmatpush1.bf16.msra.mxu0 %v970
      %1029 = vmatprep.subr.bf16.mxu0 0
      %1030 = vmatpush2.bf16.msra.mxu0 0
      %1031 = vmatprep.subr.bf16.mxu0 0
      %1032 = vmatpush2.bf16.msra.mxu0 0
      %1033 = vmatprep.subr.bf16.mxu0 0
      %1034 = vmatpush2.bf16.msra.mxu0 0
      %1035 = vmatprep.subr.bf16.mxu0 0
      %1036 = vmatpush2.bf16.msra.mxu0 0
      %1037 = vmatprep.subr.bf16.mxu0 0
      %1038 = vmatpush2.bf16.msra.mxu0 0
      %1039 = vmatprep.subr.bf16.mxu0 0
      %1040 = vmatpush2.bf16.msra.mxu0 0
      %1041 = vmatprep.subr.bf16.mxu0 0
      %1042 = vmatpush2.bf16.msra.mxu0 0
      %1043 = vmatprep.subr.bf16.mxu0 0
      %1044 = vmatpush2.bf16.msra.mxu0 0
      %1045 = vmatprep.mubr.bf16.mxu0 0
      %1046 = vmatmul.mubr.bf16.gmra.mxu0 %v961
      %v1047 = vpop.f32.mrf.mxu0
      %v1048 = vadd.f32 0.0, %v1047
      %v1049 = vpop.f32.mrf.mxu0
      %v1050 = vpop.f32.mrf.mxu0
      %v1051 = vpop.f32.mrf.mxu0
      %1052 = vdwg.mxu0
      %v1053 = vadd.f32 %v924, %v1007
      %v1054 = vadd.f32 %v925, %v1009
      %v1055 = vadd.f32 %v926, %v1048
      %s1056 = scalar_lea.vmem %s1, 20
      %v1057 = vld [vmem:[%s1056] sm:$0xf]
      %v1058 = vld [vmem:[#allocation2] sm:$0xff]
      %v1060 = vcombine.high %v1058, %v1058
      %v1062 = vunpack.c.l.s4 1983009808
      %v1063 = vunpack.c.0.s8 %v1062
      %v1064 = vlaneseq
      %v1065 = vshrl.u32 %v1064, 7
      %v1066 = vsub.s32 %v1063, %v1065
      %v1067 = vrot.slane %v1058, %v1066
      %v1069 = vunpack.c.l.s4 1983009808
      %v1070 = vunpack.c.0.s8 %v1069
      %v1071 = vlaneseq
      %v1072 = vshrl.u32 %v1071, 7
      %v1073 = vsub.s32 %v1070, %v1072
      %v1074 = vrot.slane %v1060, %v1073
      %v1075 = vcombine.high %v1067, %v1067
      %v1076 = vcombine.high %v1074, %v1074
      %1077 = vrot.lane.b32.xlu0 %v1067, 102
      %v1078 = vpop.permute.xlu0 %1077
      %1079 = vrot.lane.b32.xlu0 %v1075, 102
      %v1080 = vpop.permute.xlu0 %1079
      %1081 = vrot.lane.b32.xlu0 %v1074, 102
      %v1082 = vpop.permute.xlu0 %1081
      %1083 = vrot.lane.b32.xlu0 %v1076, 102
      %v1084 = vpop.permute.xlu0 %1083
      %vm1085 = vcmask 834560
      %v1086 = vsel %vm1085, %v1078, %v1080
      %v1087 = vsel %vm1085, %v1080, %v1082
      %v1088 = vsel %vm1085, %v1082, %v1084
      %v1090 = vsel %vm465, %v1057, 0
      %v1093 = vsel %vm227, %v1086, 0
      %v1096 = vsel %vm227, %v1087, 0
      %v1099 = vsel %vm227, %v1088, 0
      %1101 = vmatprep.subr.bf16.mxu0 0
      %1102 = vmatpush1.bf16.msra.mxu0 0
      %1103 = vmatprep.subr.bf16.mxu0 0
      %1104 = vmatpush1.bf16.msra.mxu0 0
      %1105 = vmatprep.subr.bf16.mxu0 0
      %1106 = vmatpush1.bf16.msra.mxu0 0
      %1107 = vmatprep.subr.bf16.mxu0 0
      %1108 = vmatpush1.bf16.msra.mxu0 0
      %1109 = vmatprep.subr.bf16.mxu0 0
      %1110 = vmatpush1.bf16.msra.mxu0 0
      %1111 = vmatprep.subr.bf16.mxu0 0
      %1112 = vmatpush1.bf16.msra.mxu0 0
      %1113 = vmatprep.subr.bf16.mxu0 0
      %1114 = vmatpush1.bf16.msra.mxu0 0
      %1115 = vmatprep.subr.bf16.mxu0 %v1096
      %1116 = vmatpush1.bf16.msra.mxu0 %v1093
      %1117 = vmatprep.subr.bf16.mxu0 0
      %1118 = vmatpush2.bf16.msra.mxu0 0
      %1119 = vmatprep.subr.bf16.mxu0 0
      %1120 = vmatpush2.bf16.msra.mxu0 0
      %1121 = vmatprep.subr.bf16.mxu0 0
      %1122 = vmatpush2.bf16.msra.mxu0 0
      %1123 = vmatprep.subr.bf16.mxu0 0
      %1124 = vmatpush2.bf16.msra.mxu0 0
      %1125 = vmatprep.subr.bf16.mxu0 0
      %1126 = vmatpush2.bf16.msra.mxu0 0
      %1127 = vmatprep.subr.bf16.mxu0 0
      %1128 = vmatpush2.bf16.msra.mxu0 0
      %1129 = vmatprep.subr.bf16.mxu0 0
      %1130 = vmatpush2.bf16.msra.mxu0 0
      %1131 = vmatprep.subr.bf16.mxu0 0
      %1132 = vmatpush2.bf16.msra.mxu0 0
      %1133 = vmatprep.mubr.bf16.mxu0 0
      %1134 = vmatmul.mubr.bf16.gmra.mxu0 %v1090
      %v1135 = vpop.f32.mrf.mxu0
      %v1136 = vadd.f32 0.0, %v1135
      %v1137 = vpop.f32.mrf.mxu0
      %v1138 = vadd.f32 0.0, %v1137
      %v1139 = vpop.f32.mrf.mxu0
      %v1140 = vpop.f32.mrf.mxu0
      %1141 = vdwg.mxu0
      %1142 = vmatprep.subr.bf16.mxu0 0
      %1143 = vmatpush1.bf16.msra.mxu0 0
      %1144 = vmatprep.subr.bf16.mxu0 0
      %1145 = vmatpush1.bf16.msra.mxu0 0
      %1146 = vmatprep.subr.bf16.mxu0 0
      %1147 = vmatpush1.bf16.msra.mxu0 0
      %1148 = vmatprep.subr.bf16.mxu0 0
      %1149 = vmatpush1.bf16.msra.mxu0 0
      %1150 = vmatprep.subr.bf16.mxu0 0
      %1151 = vmatpush1.bf16.msra.mxu0 0
      %1152 = vmatprep.subr.bf16.mxu0 0
      %1153 = vmatpush1.bf16.msra.mxu0 0
      %1154 = vmatprep.subr.bf16.mxu0 0
      %1155 = vmatpush1.bf16.msra.mxu0 0
      %1156 = vmatprep.subr.bf16.mxu0 0
      %1157 = vmatpush1.bf16.msra.mxu0 %v1099
      %1158 = vmatprep.subr.bf16.mxu0 0
      %1159 = vmatpush2.bf16.msra.mxu0 0
      %1160 = vmatprep.subr.bf16.mxu0 0
      %1161 = vmatpush2.bf16.msra.mxu0 0
      %1162 = vmatprep.subr.bf16.mxu0 0
      %1163 = vmatpush2.bf16.msra.mxu0 0
      %1164 = vmatprep.subr.bf16.mxu0 0
      %1165 = vmatpush2.bf16.msra.mxu0 0
      %1166 = vmatprep.subr.bf16.mxu0 0
      %1167 = vmatpush2.bf16.msra.mxu0 0
      %1168 = vmatprep.subr.bf16.mxu0 0
      %1169 = vmatpush2.bf16.msra.mxu0 0
      %1170 = vmatprep.subr.bf16.mxu0 0
      %1171 = vmatpush2.bf16.msra.mxu0 0
      %1172 = vmatprep.subr.bf16.mxu0 0
      %1173 = vmatpush2.bf16.msra.mxu0 0
      %1174 = vmatprep.mubr.bf16.mxu0 0
      %1175 = vmatmul.mubr.bf16.gmra.mxu0 %v1090
      %v1176 = vpop.f32.mrf.mxu0
      %v1177 = vadd.f32 0.0, %v1176
      %v1178 = vpop.f32.mrf.mxu0
      %v1179 = vpop.f32.mrf.mxu0
      %v1180 = vpop.f32.mrf.mxu0
      %1181 = vdwg.mxu0
      %v1182 = vadd.f32 %v1053, %v1136
      %v1183 = vadd.f32 %v1054, %v1138
      %v1184 = vadd.f32 %v1055, %v1177
      %s1185 = scalar_lea.vmem %s1, 24
      %v1186 = vld [vmem:[%s1185] sm:$0xf]
      %v1187 = vld [vmem:[#allocation2] sm:$0xff]
      %v1189 = vcombine.high %v1187, %v1187
      %v1191 = vunpack.c.l.s4 1983009808
      %v1192 = vunpack.c.0.s8 %v1191
      %v1193 = vlaneseq
      %v1194 = vshrl.u32 %v1193, 7
      %v1195 = vsub.s32 %v1192, %v1194
      %v1196 = vrot.slane %v1187, %v1195
      %v1198 = vunpack.c.l.s4 1983009808
      %v1199 = vunpack.c.0.s8 %v1198
      %v1200 = vlaneseq
      %v1201 = vshrl.u32 %v1200, 7
      %v1202 = vsub.s32 %v1199, %v1201
      %v1203 = vrot.slane %v1189, %v1202
      %v1204 = vcombine.high %v1196, %v1196
      %v1205 = vcombine.high %v1203, %v1203
      %1206 = vrot.lane.b32.xlu0 %v1196, 80
      %v1207 = vpop.permute.xlu0 %1206
      %1208 = vrot.lane.b32.xlu0 %v1204, 80
      %v1209 = vpop.permute.xlu0 %1208
      %1210 = vrot.lane.b32.xlu0 %v1203, 80
      %v1211 = vpop.permute.xlu0 %1210
      %1212 = vrot.lane.b32.xlu0 %v1205, 80
      %v1213 = vpop.permute.xlu0 %1212
      %vm1214 = vcmask 654336
      %v1215 = vsel %vm1214, %v1207, %v1209
      %v1216 = vsel %vm1214, %v1209, %v1211
      %v1217 = vsel %vm1214, %v1211, %v1213
      %v1219 = vsel %vm465, %v1186, 0
      %v1222 = vsel %vm227, %v1215, 0
      %v1225 = vsel %vm227, %v1216, 0
      %v1228 = vsel %vm227, %v1217, 0
      %1230 = vmatprep.subr.bf16.mxu0 0
      %1231 = vmatpush1.bf16.msra.mxu0 0
      %1232 = vmatprep.subr.bf16.mxu0 0
      %1233 = vmatpush1.bf16.msra.mxu0 0
      %1234 = vmatprep.subr.bf16.mxu0 0
      %1235 = vmatpush1.bf16.msra.mxu0 0
      %1236 = vmatprep.subr.bf16.mxu0 0
      %1237 = vmatpush1.bf16.msra.mxu0 0
      %1238 = vmatprep.subr.bf16.mxu0 0
      %1239 = vmatpush1.bf16.msra.mxu0 0
      %1240 = vmatprep.subr.bf16.mxu0 0
      %1241 = vmatpush1.bf16.msra.mxu0 0
      %1242 = vmatprep.subr.bf16.mxu0 0
      %1243 = vmatpush1.bf16.msra.mxu0 0
      %1244 = vmatprep.subr.bf16.mxu0 %v1225
      %1245 = vmatpush1.bf16.msra.mxu0 %v1222
      %1246 = vmatprep.subr.bf16.mxu0 0
      %1247 = vmatpush2.bf16.msra.mxu0 0
      %1248 = vmatprep.subr.bf16.mxu0 0
      %1249 = vmatpush2.bf16.msra.mxu0 0
      %1250 = vmatprep.subr.bf16.mxu0 0
      %1251 = vmatpush2.bf16.msra.mxu0 0
      %1252 = vmatprep.subr.bf16.mxu0 0
      %1253 = vmatpush2.bf16.msra.mxu0 0
      %1254 = vmatprep.subr.bf16.mxu0 0
      %1255 = vmatpush2.bf16.msra.mxu0 0
      %1256 = vmatprep.subr.bf16.mxu0 0
      %1257 = vmatpush2.bf16.msra.mxu0 0
      %1258 = vmatprep.subr.bf16.mxu0 0
      %1259 = vmatpush2.bf16.msra.mxu0 0
      %1260 = vmatprep.subr.bf16.mxu0 0
      %1261 = vmatpush2.bf16.msra.mxu0 0
      %1262 = vmatprep.mubr.bf16.mxu0 0
      %1263 = vmatmul.mubr.bf16.gmra.mxu0 %v1219
      %v1264 = vpop.f32.mrf.mxu0
      %v1265 = vadd.f32 0.0, %v1264
      %v1266 = vpop.f32.mrf.mxu0
      %v1267 = vadd.f32 0.0, %v1266
      %v1268 = vpop.f32.mrf.mxu0
      %v1269 = vpop.f32.mrf.mxu0
      %1270 = vdwg.mxu0
      %1271 = vmatprep.subr.bf16.mxu0 0
      %1272 = vmatpush1.bf16.msra.mxu0 0
      %1273 = vmatprep.subr.bf16.mxu0 0
      %1274 = vmatpush1.bf16.msra.mxu0 0
      %1275 = vmatprep.subr.bf16.mxu0 0
      %1276 = vmatpush1.bf16.msra.mxu0 0
      %1277 = vmatprep.subr.bf16.mxu0 0
      %1278 = vmatpush1.bf16.msra.mxu0 0
      %1279 = vmatprep.subr.bf16.mxu0 0
      %1280 = vmatpush1.bf16.msra.mxu0 0
      %1281 = vmatprep.subr.bf16.mxu0 0
      %1282 = vmatpush1.bf16.msra.mxu0 0
      %1283 = vmatprep.subr.bf16.mxu0 0
      %1284 = vmatpush1.bf16.msra.mxu0 0
      %1285 = vmatprep.subr.bf16.mxu0 0
      %1286 = vmatpush1.bf16.msra.mxu0 %v1228
      %1287 = vmatprep.subr.bf16.mxu0 0
      %1288 = vmatpush2.bf16.msra.mxu0 0
      %1289 = vmatprep.subr.bf16.mxu0 0
      %1290 = vmatpush2.bf16.msra.mxu0 0
      %1291 = vmatprep.subr.bf16.mxu0 0
      %1292 = vmatpush2.bf16.msra.mxu0 0
      %1293 = vmatprep.subr.bf16.mxu0 0
      %1294 = vmatpush2.bf16.msra.mxu0 0
      %1295 = vmatprep.subr.bf16.mxu0 0
      %1296 = vmatpush2.bf16.msra.mxu0 0
      %1297 = vmatprep.subr.bf16.mxu0 0
      %1298 = vmatpush2.bf16.msra.mxu0 0
      %1299 = vmatprep.subr.bf16.mxu0 0
      %1300 = vmatpush2.bf16.msra.mxu0 0
      %1301 = vmatprep.subr.bf16.mxu0 0
      %1302 = vmatpush2.bf16.msra.mxu0 0
      %1303 = vmatprep.mubr.bf16.mxu0 0
      %1304 = vmatmul.mubr.bf16.gmra.mxu0 %v1219
      %v1305 = vpop.f32.mrf.mxu0
      %v1306 = vadd.f32 0.0, %v1305
      %v1307 = vpop.f32.mrf.mxu0
      %v1308 = vpop.f32.mrf.mxu0
      %v1309 = vpop.f32.mrf.mxu0
      %1310 = vdwg.mxu0
      %v1311 = vadd.f32 %v1182, %v1265
      %v1312 = vadd.f32 %v1183, %v1267
      %v1313 = vadd.f32 %v1184, %v1306
      %s1314 = scalar_lea.vmem %s1, 28
      %v1315 = vld [vmem:[%s1314] sm:$0xf]
      %v1316 = vld [vmem:[#allocation2] sm:$0xff]
      %v1318 = vcombine.high %v1316, %v1316
      %v1320 = vunpack.c.l.s4 1983009808
      %v1321 = vunpack.c.0.s8 %v1320
      %v1322 = vlaneseq
      %v1323 = vshrl.u32 %v1322, 7
      %v1324 = vsub.s32 %v1321, %v1323
      %v1325 = vrot.slane %v1316, %v1324
      %v1327 = vunpack.c.l.s4 1983009808
      %v1328 = vunpack.c.0.s8 %v1327
      %v1329 = vlaneseq
      %v1330 = vshrl.u32 %v1329, 7
      %v1331 = vsub.s32 %v1328, %v1330
      %v1332 = vrot.slane %v1318, %v1331
      %v1333 = vcombine.high %v1325, %v1325
      %v1334 = vcombine.high %v1332, %v1332
      %1335 = vrot.lane.b32.xlu0 %v1325, 79
      %v1336 = vpop.permute.xlu0 %1335
      %1337 = vrot.lane.b32.xlu0 %v1333, 79
      %v1338 = vpop.permute.xlu0 %1337
      %1339 = vrot.lane.b32.xlu0 %v1332, 79
      %v1340 = vpop.permute.xlu0 %1339
      %1341 = vrot.lane.b32.xlu0 %v1334, 79
      %v1342 = vpop.permute.xlu0 %1341
      %vm1343 = vcmask 646144
      %v1344 = vsel %vm1343, %v1336, %v1338
      %v1345 = vsel %vm1343, %v1338, %v1340
      %v1346 = vsel %vm1343, %v1340, %v1342
      %v1348 = vsel %vm465, %v1315, 0
      %v1351 = vsel %vm227, %v1344, 0
      %v1354 = vsel %vm227, %v1345, 0
      %v1357 = vsel %vm227, %v1346, 0
      %1359 = vmatprep.subr.bf16.mxu0 0
      %1360 = vmatpush1.bf16.msra.mxu0 0
      %1361 = vmatprep.subr.bf16.mxu0 0
      %1362 = vmatpush1.bf16.msra.mxu0 0
      %1363 = vmatprep.subr.bf16.mxu0 0
      %1364 = vmatpush1.bf16.msra.mxu0 0
      %1365 = vmatprep.subr.bf16.mxu0 0
      %1366 = vmatpush1.bf16.msra.mxu0 0
      %1367 = vmatprep.subr.bf16.mxu0 0
      %1368 = vmatpush1.bf16.msra.mxu0 0
      %1369 = vmatprep.subr.bf16.mxu0 0
      %1370 = vmatpush1.bf16.msra.mxu0 0
      %1371 = vmatprep.subr.bf16.mxu0 0
      %1372 = vmatpush1.bf16.msra.mxu0 0
      %1373 = vmatprep.subr.bf16.mxu0 %v1354
      %1374 = vmatpush1.bf16.msra.mxu0 %v1351
      %1375 = vmatprep.subr.bf16.mxu0 0
      %1376 = vmatpush2.bf16.msra.mxu0 0
      %1377 = vmatprep.subr.bf16.mxu0 0
      %1378 = vmatpush2.bf16.msra.mxu0 0
      %1379 = vmatprep.subr.bf16.mxu0 0
      %1380 = vmatpush2.bf16.msra.mxu0 0
      %1381 = vmatprep.subr.bf16.mxu0 0
      %1382 = vmatpush2.bf16.msra.mxu0 0
      %1383 = vmatprep.subr.bf16.mxu0 0
      %1384 = vmatpush2.bf16.msra.mxu0 0
      %1385 = vmatprep.subr.bf16.mxu0 0
      %1386 = vmatpush2.bf16.msra.mxu0 0
      %1387 = vmatprep.subr.bf16.mxu0 0
      %1388 = vmatpush2.bf16.msra.mxu0 0
      %1389 = vmatprep.subr.bf16.mxu0 0
      %1390 = vmatpush2.bf16.msra.mxu0 0
      %1391 = vmatprep.mubr.bf16.mxu0 0
      %1392 = vmatmul.mubr.bf16.gmra.mxu0 %v1348
      %v1393 = vpop.f32.mrf.mxu0
      %v1394 = vadd.f32 0.0, %v1393
      %v1395 = vpop.f32.mrf.mxu0
      %v1396 = vadd.f32 0.0, %v1395
      %v1397 = vpop.f32.mrf.mxu0
      %v1398 = vpop.f32.mrf.mxu0
      %1399 = vdwg.mxu0
      %1400 = vmatprep.subr.bf16.mxu0 0
      %1401 = vmatpush1.bf16.msra.mxu0 0
      %1402 = vmatprep.subr.bf16.mxu0 0
      %1403 = vmatpush1.bf16.msra.mxu0 0
      %1404 = vmatprep.subr.bf16.mxu0 0
      %1405 = vmatpush1.bf16.msra.mxu0 0
      %1406 = vmatprep.subr.bf16.mxu0 0
      %1407 = vmatpush1.bf16.msra.mxu0 0
      %1408 = vmatprep.subr.bf16.mxu0 0
      %1409 = vmatpush1.bf16.msra.mxu0 0
      %1410 = vmatprep.subr.bf16.mxu0 0
      %1411 = vmatpush1.bf16.msra.mxu0 0
      %1412 = vmatprep.subr.bf16.mxu0 0
      %1413 = vmatpush1.bf16.msra.mxu0 0
      %1414 = vmatprep.subr.bf16.mxu0 0
      %1415 = vmatpush1.bf16.msra.mxu0 %v1357
      %1416 = vmatprep.subr.bf16.mxu0 0
      %1417 = vmatpush2.bf16.msra.mxu0 0
      %1418 = vmatprep.subr.bf16.mxu0 0
      %1419 = vmatpush2.bf16.msra.mxu0 0
      %1420 = vmatprep.subr.bf16.mxu0 0
      %1421 = vmatpush2.bf16.msra.mxu0 0
      %1422 = vmatprep.subr.bf16.mxu0 0
      %1423 = vmatpush2.bf16.msra.mxu0 0
      %1424 = vmatprep.subr.bf16.mxu0 0
      %1425 = vmatpush2.bf16.msra.mxu0 0
      %1426 = vmatprep.subr.bf16.mxu0 0
      %1427 = vmatpush2.bf16.msra.mxu0 0
      %1428 = vmatprep.subr.bf16.mxu0 0
      %1429 = vmatpush2.bf16.msra.mxu0 0
      %1430 = vmatprep.subr.bf16.mxu0 0
      %1431 = vmatpush2.bf16.msra.mxu0 0
      %1432 = vmatprep.mubr.bf16.mxu0 0
      %1433 = vmatmul.mubr.bf16.gmra.mxu0 %v1348
      %v1434 = vpop.f32.mrf.mxu0
      %v1435 = vadd.f32 0.0, %v1434
      %v1436 = vpop.f32.mrf.mxu0
      %v1437 = vpop.f32.mrf.mxu0
      %v1438 = vpop.f32.mrf.mxu0
      %1439 = vdwg.mxu0
      %v1440 = vadd.f32 %v1311, %v1394
      %v1441 = vadd.f32 %v1312, %v1396
      %v1442 = vadd.f32 %v1313, %v1435
      %s1443 = scalar_lea.vmem %s1, 32
      %v1444 = vld [vmem:[%s1443] sm:$0xf]
      %v1445 = vld [vmem:[#allocation2] sm:$0xff]
      %v1447 = vcombine.high %v1445, %v1445
      %v1449 = vunpack.c.l.s4 1983009808
      %v1450 = vunpack.c.0.s8 %v1449
      %v1451 = vlaneseq
      %v1452 = vshrl.u32 %v1451, 7
      %v1453 = vsub.s32 %v1450, %v1452
      %v1454 = vrot.slane %v1445, %v1453
      %v1456 = vunpack.c.l.s4 1983009808
      %v1457 = vunpack.c.0.s8 %v1456
      %v1458 = vlaneseq
      %v1459 = vshrl.u32 %v1458, 7
      %v1460 = vsub.s32 %v1457, %v1459
      %v1461 = vrot.slane %v1447, %v1460
      %v1462 = vcombine.high %v1454, %v1454
      %v1463 = vcombine.high %v1461, %v1461
      %1464 = vrot.lane.b32.xlu0 %v1454, 78
      %v1465 = vpop.permute.xlu0 %1464
      %1466 = vrot.lane.b32.xlu0 %v1462, 78
      %v1467 = vpop.permute.xlu0 %1466
      %1468 = vrot.lane.b32.xlu0 %v1461, 78
      %v1469 = vpop.permute.xlu0 %1468
      %1470 = vrot.lane.b32.xlu0 %v1463, 78
      %v1471 = vpop.permute.xlu0 %1470
      %vm1472 = vcmask 637952
      %v1473 = vsel %vm1472, %v1465, %v1467
      %v1474 = vsel %vm1472, %v1467, %v1469
      %v1475 = vsel %vm1472, %v1469, %v1471
      %v1477 = vsel %vm465, %v1444, 0
      %v1480 = vsel %vm227, %v1473, 0
      %v1483 = vsel %vm227, %v1474, 0
      %v1486 = vsel %vm227, %v1475, 0
      %1488 = vmatprep.subr.bf16.mxu0 0
      %1489 = vmatpush1.bf16.msra.mxu0 0
      %1490 = vmatprep.subr.bf16.mxu0 0
      %1491 = vmatpush1.bf16.msra.mxu0 0
      %1492 = vmatprep.subr.bf16.mxu0 0
      %1493 = vmatpush1.bf16.msra.mxu0 0
      %1494 = vmatprep.subr.bf16.mxu0 0
      %1495 = vmatpush1.bf16.msra.mxu0 0
      %1496 = vmatprep.subr.bf16.mxu0 0
      %1497 = vmatpush1.bf16.msra.mxu0 0
      %1498 = vmatprep.subr.bf16.mxu0 0
      %1499 = vmatpush1.bf16.msra.mxu0 0
      %1500 = vmatprep.subr.bf16.mxu0 0
      %1501 = vmatpush1.bf16.msra.mxu0 0
      %1502 = vmatprep.subr.bf16.mxu0 %v1483
      %1503 = vmatpush1.bf16.msra.mxu0 %v1480
      %1504 = vmatprep.subr.bf16.mxu0 0
      %1505 = vmatpush2.bf16.msra.mxu0 0
      %1506 = vmatprep.subr.bf16.mxu0 0
      %1507 = vmatpush2.bf16.msra.mxu0 0
      %1508 = vmatprep.subr.bf16.mxu0 0
      %1509 = vmatpush2.bf16.msra.mxu0 0
      %1510 = vmatprep.subr.bf16.mxu0 0
      %1511 = vmatpush2.bf16.msra.mxu0 0
      %1512 = vmatprep.subr.bf16.mxu0 0
      %1513 = vmatpush2.bf16.msra.mxu0 0
      %1514 = vmatprep.subr.bf16.mxu0 0
      %1515 = vmatpush2.bf16.msra.mxu0 0
      %1516 = vmatprep.subr.bf16.mxu0 0
      %1517 = vmatpush2.bf16.msra.mxu0 0
      %1518 = vmatprep.subr.bf16.mxu0 0
      %1519 = vmatpush2.bf16.msra.mxu0 0
      %1520 = vmatprep.mubr.bf16.mxu0 0
      %1521 = vmatmul.mubr.bf16.gmra.mxu0 %v1477
      %v1522 = vpop.f32.mrf.mxu0
      %v1523 = vadd.f32 0.0, %v1522
      %v1524 = vpop.f32.mrf.mxu0
      %v1525 = vadd.f32 0.0, %v1524
      %v1526 = vpop.f32.mrf.mxu0
      %v1527 = vpop.f32.mrf.mxu0
      %1528 = vdwg.mxu0
      %1529 = vmatprep.subr.bf16.mxu0 0
      %1530 = vmatpush1.bf16.msra.mxu0 0
      %1531 = vmatprep.subr.bf16.mxu0 0
      %1532 = vmatpush1.bf16.msra.mxu0 0
      %1533 = vmatprep.subr.bf16.mxu0 0
      %1534 = vmatpush1.bf16.msra.mxu0 0
      %1535 = vmatprep.subr.bf16.mxu0 0
      %1536 = vmatpush1.bf16.msra.mxu0 0
      %1537 = vmatprep.subr.bf16.mxu0 0
      %1538 = vmatpush1.bf16.msra.mxu0 0
      %1539 = vmatprep.subr.bf16.mxu0 0
      %1540 = vmatpush1.bf16.msra.mxu0 0
      %1541 = vmatprep.subr.bf16.mxu0 0
      %1542 = vmatpush1.bf16.msra.mxu0 0
      %1543 = vmatprep.subr.bf16.mxu0 0
      %1544 = vmatpush1.bf16.msra.mxu0 %v1486
      %1545 = vmatprep.subr.bf16.mxu0 0
      %1546 = vmatpush2.bf16.msra.mxu0 0
      %1547 = vmatprep.subr.bf16.mxu0 0
      %1548 = vmatpush2.bf16.msra.mxu0 0
      %1549 = vmatprep.subr.bf16.mxu0 0
      %1550 = vmatpush2.bf16.msra.mxu0 0
      %1551 = vmatprep.subr.bf16.mxu0 0
      %1552 = vmatpush2.bf16.msra.mxu0 0
      %1553 = vmatprep.subr.bf16.mxu0 0
      %1554 = vmatpush2.bf16.msra.mxu0 0
      %1555 = vmatprep.subr.bf16.mxu0 0
      %1556 = vmatpush2.bf16.msra.mxu0 0
      %1557 = vmatprep.subr.bf16.mxu0 0
      %1558 = vmatpush2.bf16.msra.mxu0 0
      %1559 = vmatprep.subr.bf16.mxu0 0
      %1560 = vmatpush2.bf16.msra.mxu0 0
      %1561 = vmatprep.mubr.bf16.mxu0 0
      %1562 = vmatmul.mubr.bf16.gmra.mxu0 %v1477
      %v1563 = vpop.f32.mrf.mxu0
      %v1564 = vadd.f32 0.0, %v1563
      %v1565 = vpop.f32.mrf.mxu0
      %v1566 = vpop.f32.mrf.mxu0
      %v1567 = vpop.f32.mrf.mxu0
      %1568 = vdwg.mxu0
      %v1569 = vadd.f32 %v1440, %v1523
      %v1570 = vadd.f32 %v1441, %v1525
      %v1571 = vadd.f32 %v1442, %v1564
      %v1572 = vld [vmem:[%s2] sm:$0xff]
      %1574 = vset.pattern.permute.xlu0 0
      %1575 = vperm.xlu0 %1574, %v1572
      %v1576 = vpop.permute.xlu0 %1575
      %v1578 = vadd.f32 %v1569, %v1576
      %v1579 = vadd.f32 %v1570, %v1576
      %v1580 = vadd.f32 %v1571, %v1576
      %v1581 = vmax.f32 %v1578, 0.0
      %v1582 = vmax.f32 %v1579, 0.0
      %v1583 = vmax.f32 %v1580, 0.0
      %v1584 = vpack.c.bf16 %v1581, %v1581
      %v1585 = vpack.c.bf16 %v1582, %v1582
      %v1586 = vpack.c.bf16 %v1583, %v1583
      %v1587 = vld [vmem:[%s3] sm:$0x3]
      %v1588 = vld [vmem:[%s4] sm:$0xf]
      %1590 = vset.pattern.permute.xlu0 0
      %1591 = vperm.xlu0 %1590, %v1588
      %v1592 = vpop.permute.xlu0 %1591
      %vm1594 = vcmask 64512
      %v1596 = vsel %vm1594, %v1587, 0
      %vm1598 = vcmask 1043456
      %v1600 = vsel %vm1598, %v1584, 0
      %v1603 = vsel %vm1598, %v1585, 0
      %v1606 = vsel %vm1598, %v1586, 0
      %1608 = vmatprep.subr.bf16.mxu0 0
      %1609 = vmatpush1.bf16.msra.mxu0 0
      %1610 = vmatprep.subr.bf16.mxu0 0
      %1611 = vmatpush1.bf16.msra.mxu0 0
      %1612 = vmatprep.subr.bf16.mxu0 0
      %1613 = vmatpush1.bf16.msra.mxu0 0
      %1614 = vmatprep.subr.bf16.mxu0 0
      %1615 = vmatpush1.bf16.msra.mxu0 0
      %1616 = vmatprep.subr.bf16.mxu0 0
      %1617 = vmatpush1.bf16.msra.mxu0 0
      %1618 = vmatprep.subr.bf16.mxu0 0
      %1619 = vmatpush1.bf16.msra.mxu0 0
      %1620 = vmatprep.subr.bf16.mxu0 0
      %1621 = vmatpush1.bf16.msra.mxu0 0
      %1622 = vmatprep.subr.bf16.mxu0 %v1603
      %1623 = vmatpush1.bf16.msra.mxu0 %v1600
      %1624 = vmatprep.subr.bf16.mxu0 0
      %1625 = vmatpush2.bf16.msra.mxu0 0
      %1626 = vmatprep.subr.bf16.mxu0 0
      %1627 = vmatpush2.bf16.msra.mxu0 0
      %1628 = vmatprep.subr.bf16.mxu0 0
      %1629 = vmatpush2.bf16.msra.mxu0 0
      %1630 = vmatprep.subr.bf16.mxu0 0
      %1631 = vmatpush2.bf16.msra.mxu0 0
      %1632 = vmatprep.subr.bf16.mxu0 0
      %1633 = vmatpush2.bf16.msra.mxu0 0
      %1634 = vmatprep.subr.bf16.mxu0 0
      %1635 = vmatpush2.bf16.msra.mxu0 0
      %1636 = vmatprep.subr.bf16.mxu0 0
      %1637 = vmatpush2.bf16.msra.mxu0 0
      %1638 = vmatprep.subr.bf16.mxu0 0
      %1639 = vmatpush2.bf16.msra.mxu0 0
      %1640 = vmatprep.mubr.bf16.mxu0 0
      %1641 = vmatmul.mubr.bf16.gmra.mxu0 %v1596
      %v1642 = vpop.f32.mrf.mxu0
      %v1643 = vadd.f32 %v1592, %v1642
      %v1644 = vpop.f32.mrf.mxu0
      %v1645 = vadd.f32 %v1592, %v1644
      %v1646 = vpop.f32.mrf.mxu0
      %v1647 = vpop.f32.mrf.mxu0
      %1648 = vdwg.mxu0
      %1649 = vmatprep.subr.bf16.mxu0 0
      %1650 = vmatpush1.bf16.msra.mxu0 0
      %1651 = vmatprep.subr.bf16.mxu0 0
      %1652 = vmatpush1.bf16.msra.mxu0 0
      %1653 = vmatprep.subr.bf16.mxu0 0
      %1654 = vmatpush1.bf16.msra.mxu0 0
      %1655 = vmatprep.subr.bf16.mxu0 0
      %1656 = vmatpush1.bf16.msra.mxu0 0
      %1657 = vmatprep.subr.bf16.mxu0 0
      %1658 = vmatpush1.bf16.msra.mxu0 0
      %1659 = vmatprep.subr.bf16.mxu0 0
      %1660 = vmatpush1.bf16.msra.mxu0 0
      %1661 = vmatprep.subr.bf16.mxu0 0
      %1662 = vmatpush1.bf16.msra.mxu0 0
      %1663 = vmatprep.subr.bf16.mxu0 0
      %1664 = vmatpush1.bf16.msra.mxu0 %v1606
      %1665 = vmatprep.subr.bf16.mxu0 0
      %1666 = vmatpush2.bf16.msra.mxu0 0
      %1667 = vmatprep.subr.bf16.mxu0 0
      %1668 = vmatpush2.bf16.msra.mxu0 0
      %1669 = vmatprep.subr.bf16.mxu0 0
      %1670 = vmatpush2.bf16.msra.mxu0 0
      %1671 = vmatprep.subr.bf16.mxu0 0
      %1672 = vmatpush2.bf16.msra.mxu0 0
      %1673 = vmatprep.subr.bf16.mxu0 0
      %1674 = vmatpush2.bf16.msra.mxu0 0
      %1675 = vmatprep.subr.bf16.mxu0 0
      %1676 = vmatpush2.bf16.msra.mxu0 0
      %1677 = vmatprep.subr.bf16.mxu0 0
      %1678 = vmatpush2.bf16.msra.mxu0 0
      %1679 = vmatprep.subr.bf16.mxu0 0
      %1680 = vmatpush2.bf16.msra.mxu0 0
      %1681 = vmatprep.mubr.bf16.mxu0 0
      %1682 = vmatmul.mubr.bf16.gmra.mxu0 %v1596
      %v1683 = vpop.f32.mrf.mxu0
      %v1684 = vadd.f32 %v1592, %v1683
      %v1685 = vpop.f32.mrf.mxu0
      %v1686 = vpop.f32.mrf.mxu0
      %v1687 = vpop.f32.mrf.mxu0
      %1688 = vdwg.mxu0
      %1690 = vrot.lane.b32.xlu0 %v1643, 120
      %v1691 = vpop.permute.xlu0 %1690
      %1693 = vrot.lane.b32.xlu0 %v1643, 112
      %v1694 = vpop.permute.xlu0 %1693
      %1696 = vrot.lane.b32.xlu0 %v1643, 104
      %v1697 = vpop.permute.xlu0 %1696
      %1699 = vrot.lane.b32.xlu0 %v1643, 96
      %v1700 = vpop.permute.xlu0 %1699
      %1703 = vrot.lane.b32.xlu0 %v1643, 88
      %v1704 = vpop.permute.xlu0 %1703
      %1705 = vrot.lane.b32.xlu0 %v1645, 88
      %v1706 = vpop.permute.xlu0 %1705
      %vm1707 = vcmask 719872
      %v1708 = vsel %vm1707, %v1704, %v1706
      %1710 = vrot.lane.b32.xlu0 %v1645, 80
      %v1711 = vpop.permute.xlu0 %1710
      %1713 = vrot.lane.b32.xlu0 %v1645, 72
      %v1714 = vpop.permute.xlu0 %1713
      %1716 = vrot.lane.b32.xlu0 %v1645, 64
      %v1717 = vpop.permute.xlu0 %1716
      %1719 = vrot.lane.b32.xlu0 %v1645, 56
      %v1720 = vpop.permute.xlu0 %1719
      %1722 = vrot.lane.b32.xlu0 %v1645, 48
      %v1723 = vpop.permute.xlu0 %1722
      %1726 = vrot.lane.b32.xlu0 %v1684, 40
      %v1727 = vpop.permute.xlu0 %1726
      %1729 = vrot.lane.b32.xlu0 %v1684, 32
      %v1730 = vpop.permute.xlu0 %1729
      %1732 = vrot.lane.b32.xlu0 %v1684, 24
      %v1733 = vpop.permute.xlu0 %1732
      %1735 = vrot.lane.b32.xlu0 %v1684, 16
      %v1736 = vpop.permute.xlu0 %1735
      %1738 = vrot.lane.b32.xlu0 %v1684, 8
      %v1739 = vpop.permute.xlu0 %1738
      %vm1741 = vcmask 130048
      %v1742 = vsel %vm1741, %v1643, %v1691
      %vm1743 = vcmask 261120
      %v1744 = vsel %vm1743, %v1742, %v1694
      %vm1745 = vcmask 392192
      %v1746 = vsel %vm1745, %v1744, %v1697
      %vm1747 = vcmask 523264
      %v1748 = vsel %vm1747, %v1746, %v1700
      %vm1749 = vcmask 654336
      %v1750 = vsel %vm1749, %v1748, %v1708
      %vm1751 = vcmask 785408
      %v1752 = vsel %vm1751, %v1750, %v1711
      %vm1753 = vcmask 916480
      %v1754 = vsel %vm1753, %v1752, %v1714
      %v1755 = vsel %vm1741, %v1717, %v1720
      %v1756 = vsel %vm1743, %v1755, %v1723
      %v1757 = vsel %vm1745, %v1756, %v1727
      %v1758 = vsel %vm1747, %v1757, %v1730
      %v1759 = vsel %vm1749, %v1758, %v1733
      %v1760 = vsel %vm1751, %v1759, %v1736
      %v1761 = vsel %vm1753, %v1760, %v1739
      %v1762 = vadd.f32 %v1754, %v226
      %v1763 = vadd.f32 %v1761, %v290
      %v1764 = vmax.f32 %v1762, 0.0
      %v1765 = vmax.f32 %v1763, 0.0
      %v1768 = vcombine.low %v1764, %v1765
      %1770 = vst [vmem:[%s224] sm:$0xff] %v1768
      %p1771 = scmp.lt.s32.totalorder %s16, 1
      %s1772 = scalar_select %p1771, %s16, 1
      %s1773 = smul.addr %s1772, 2
      %s1774 = smul.addr %s1773, 4
      %s1775 = scalar_lea.vmem %s5, %s1774
      // Predicated region
      $region41: #{resblock_forward.1} parent=39 // pred_check
        %p1776 = pneg %p144
      $region42: #{resblock_forward.1} parent=39 // pred_check_branch
        %1778 = sbr.rel (%p1776) target = $region44
      $region43: #{resblock_forward.1} parent=39 // pred_region
        _
      $region44: #{resblock_forward.1} parent=39 // pred_fallthru
        _
    $region40: #{resblock_forward.1} parent=5 // pred_fallthru
      _
    %p1779 = scmp.le.s32.totalorder 2, %s11
    // Predicated region
    $region45: #{resblock_forward.1} parent=5 // pred_check
      %p1780 = pneg %p1779
    $region46: #{resblock_forward.1} parent=5 // pred_check_branch
      %1782 = sbr.rel (%p1780) target = $region48
    $region47: #{resblock_forward.1} parent=5 // pred_region
      %s1783 = ssub.s32 %s11, 2
      // Predicated region
      $region49: #{resblock_forward.1} parent=47 // pred_check
        %p1784 = pneg %p150
      $region50: #{resblock_forward.1} parent=47 // pred_check_branch
        %1786 = sbr.rel (%p1784) target = $region52
      $region51: #{resblock_forward.1} parent=47 // pred_region
        %p1787 = scmp.lt.s32.totalorder %s17, 1
        %s1788 = scalar_select %p1787, %s17, 1
        %s1789 = smul.addr %s1788, 2
        %s1790 = smul.addr %s1789, 4
        %s1791 = scalar_lea.vmem %s5, %s1790
      $region52: #{resblock_forward.1} parent=47 // pred_fallthru
        _
    $region48: #{resblock_forward.1} parent=5 // pred_fallthru
      _
  $region6: #{resblock_forward.1} parent=0 // loop_footer
    %s15 = sadd.s32 1, %s11
  $region7: #{resblock_forward.1} parent=0 // loop_footer_branch
    %10 = sbr.rel target = $region3
  $region8: #{resblock_forward.1} parent=0 // loop_exit
    _

</llo_original>
